<compile_context>
chip_gen: v7x
topology: tpu7x:2x2x1
jax: 0.10.0
libtpu: 0.0.40
codegen_flags: <defaults>
</compile_context>

<pallas_src>
import functools

import jax
import jax.numpy as jnp
from jax.experimental import pallas as pl
from jax.experimental.pallas import tpu as pltpu


def conv_bn_act_kernel(x_ref, w_ref, scale_ref, bias_ref, o_ref, *,
                       W, KH, KW, Cin, Cout, TH, pad_h, pad_w,
                       has_residual, group_kh):
    """Grid = (N, H // TH): one image per outer step, TH output rows per step.

    x_ref:     (1, H+2ph, W+2pw, Cin) bf16  zero-padded image (padding done in
                                            the wrapper, fused with the layout
                                            cast); block index ignores th so it
                                            is DMA'd once per image.
    w_ref:     (KH*KW*Cin, Cout) bf16       conv weight, tap-major rows.
    scale_ref: (1, Cout) f32                gamma / sqrt(var + eps)
    bias_ref:  (1, Cout) f32                beta - mean * scale
    o_ref:     (1, TH, W, Cout) bf16        output row tile.
    """
    th = pl.program_id(1)
    row0 = pl.multiple_of(th * TH, TH)        # first output row of this tile

    def tap(kh, kw):
        # (TH, W, Cin) window of the padded image for kernel tap (kh, kw).
        # Always in range because the image is pre-padded -> no halo logic,
        # no scratch copy, no masking.
        t = x_ref[0, pl.ds(row0 + kh, TH), kw:kw + W, :]
        return t.reshape(TH * W, Cin)

    if not group_kh:
        # Small Cin: fold all KH*KW taps into the contraction dim and do ONE
        # MXU matmul.  The patch is a register value (no scratch stores).
        patch = jnp.concatenate(
            [tap(kh, kw) for kh in range(KH) for kw in range(KW)], axis=-1)
        acc = jnp.dot(patch, w_ref[...], preferred_element_type=jnp.float32)
    else:
        # Large Cin: group the KW taps per kh -> K = KW*Cin (>= 3*128) fills
        # the 256-wide v6e/v7x MXU; only KH accumulation passes.
        acc = None
        for kh in range(KH):
            p = jnp.concatenate([tap(kh, kw) for kw in range(KW)], axis=-1)
            d = jnp.dot(p, w_ref[kh * KW * Cin:(kh + 1) * KW * Cin, :],
                        preferred_element_type=jnp.float32)
            acc = d if acc is None else acc + d

    # Fused BatchNorm (inference) + SiLU in f32.
    y = acc * scale_ref[...] + bias_ref[...]
    y = y * jax.nn.sigmoid(y)

    if has_residual:
        # Interior of the already-resident padded block (Cin == Cout, stride 1)
        # -> no second HBM stream.  Residual goes through bf16 (noted).
        res = x_ref[0, pl.ds(row0 + pad_h, TH), pad_w:pad_w + W, :]
        y = y + res.astype(jnp.float32).reshape(TH * W, Cout)

    o_ref[0] = y.reshape(TH, W, Cout).astype(o_ref.dtype)


def _pick_tile_h(H, W, Cin, Cout, KH, KW):
    """Largest divisor of H whose tile carries ~1 MiB of operand traffic."""
    row_bytes = W * max(KH * KW * Cin * 2, Cout * 4)
    target = max(1, (1 << 20) // max(row_bytes, 1))
    if target >= H:
        return H
    best = 1
    for th in range(target, 0, -1):
        if H % th == 0:
            best = th
            break
    # Degenerate divisor (e.g. prime H): take the whole image if affordable.
    if best * 8 < target and H * row_bytes <= (8 << 20):
        return H
    return best


def variable_length_conv_bn_act(x, weight_oihw, gamma, beta,
                                running_mean, running_var, eps=1e-5,
                                has_residual=True, tile_h=None,
                                out_dtype=jnp.bfloat16, nchw_output=True):
    """Forward of VariableLengthConvBnAct. `x` may be a tensor or a list."""
    if isinstance(x, (list, tuple)):
        # Varlen dispatch: the original module maps the same dense compute
        # over the list elements.
        return [variable_length_conv_bn_act(
                    xi, weight_oihw, gamma, beta, running_mean, running_var,
                    eps=eps, has_residual=has_residual, tile_h=tile_h,
                    out_dtype=out_dtype, nchw_output=nchw_output)
                for xi in x]

    N, Cin, H, W = x.shape
    Cout, Cin_w, KH, KW = weight_oihw.shape
    assert Cin_w == Cin
    assert KH % 2 == 1 and KW % 2 == 1, "odd kernel ('same' padding) only"
    if has_residual:
        assert Cin == Cout, "residual path requires Cin == Cout (stride 1)"
    ph, pw = KH // 2, KW // 2
    Hp, Wp = H + 2 * ph, W + 2 * pw

    TH = int(tile_h) if tile_h is not None else _pick_tile_h(H, W, Cin, Cout, KH, KW)
    assert H % TH == 0
    num_th = H // TH

    # ONE fused wrapper pass: NCHW -> NHWC transpose + bf16 cast + zero pad.
    # The transpose/cast already rewrites x once; fusing the pad into that
    # same pass costs only the halo columns/rows and removes all in-kernel
    # padding work (zero-fill + full-image VMEM copy).
    x_pad = jnp.pad(jnp.transpose(x, (0, 2, 3, 1)).astype(jnp.bfloat16),
                    ((0, 0), (ph, ph), (pw, pw), (0, 0)))

    # Weight: OIHW -> (KH*KW*Cin, Cout), tap-major (kh, kw, ci) rows, bf16.
    w_mat = (jnp.transpose(weight_oihw, (2, 3, 1, 0))
                .reshape(KH * KW * Cin, Cout).astype(jnp.bfloat16))

    inv_std = 1.0 / jnp.sqrt(running_var + eps)
    scale = (gamma * inv_std).reshape(1, Cout).astype(jnp.float32)
    bias = (beta - running_mean * gamma * inv_std).reshape(1, Cout).astype(jnp.float32)

    # Cin < 128: fold all taps (K = 9*Cin). Cin >= 128: per-tap K already fills
    # a 128-wide MXU; kh-grouping (K = 3*Cin >= 384) also fills v6e/v7x's 256.
    group_kh = Cin >= 128

    kernel = functools.partial(
        conv_bn_act_kernel, W=W, KH=KH, KW=KW, Cin=Cin, Cout=Cout,
        TH=TH, pad_h=ph, pad_w=pw,
        has_residual=has_residual, group_kh=group_kh)

    # Explicit VMEM budget: 2x padded-image block + 2x weights + 2x output
    # tile + patch/accumulator values (may spill) + BN params, with margin.
    est = (2 * Hp * Wp * Cin * 2 + 2 * KH * KW * Cin * Cout * 2
           + 2 * TH * W * Cout * 2 + TH * W * KH * KW * Cin * 2
           + TH * W * Cout * 4 + 8 * Cout * 4)
    vmem_limit = int(min(max(2 * est, 32 * 2**20), 64 * 2**20))

    out_nhwc = pl.pallas_call(
        kernel,
        out_shape=jax.ShapeDtypeStruct((N, H, W, Cout), out_dtype),
        grid_spec=pltpu.PrefetchScalarGridSpec(
            num_scalar_prefetch=0,
            grid=(N, num_th),
            in_specs=[
                # Padded image: block index ignores th -> fetched once per
                # image, no re-DMA across row tiles.
                pl.BlockSpec((1, Hp, Wp, Cin), lambda n, t: (n, 0, 0, 0)),
                # Weight / BN params stay VMEM-resident (constant block index).
                pl.BlockSpec((KH * KW * Cin, Cout), lambda n, t: (0, 0)),
                pl.BlockSpec((1, Cout), lambda n, t: (0, 0)),
                pl.BlockSpec((1, Cout), lambda n, t: (0, 0)),
            ],
            out_specs=pl.BlockSpec((1, TH, W, Cout), lambda n, t: (n, t, 0, 0)),
        ),
        # No cross-step scratch state anymore -> both axes independent, both
        # megacore-parallel (important for batch-1 inference on v7x's 2 TCs).
        compiler_params=pltpu.CompilerParams(
            dimension_semantics=("parallel", "parallel"),
            vmem_limit_bytes=vmem_limit),
    )(x_pad, w_mat, scale, bias)

    if not nchw_output:
        return out_nhwc                      # chainable NHWC (skips transpose)
    return jnp.transpose(out_nhwc, (0, 3, 1, 2))


def _reference(x_nchw, weight_oihw, gamma, beta, mean, var, eps=1e-5):
    y = jax.lax.conv_general_dilated(
        x_nchw, weight_oihw, window_strides=(1, 1), padding="SAME",
        dimension_numbers=("NCHW", "OIHW", "NCHW"))
    s = (gamma / jnp.sqrt(var + eps)).reshape(1, -1, 1, 1)
    b = (beta - mean * gamma / jnp.sqrt(var + eps)).reshape(1, -1, 1, 1)
    y = y * s + b
    y = y * jax.nn.sigmoid(y)   # SiLU
    return y + x_nchw           # residual (drop_path_rate == 0 / eval)


if __name__ == "__main__":
    key = jax.random.PRNGKey(0)
    N, C, H, W = 2, 8, 16, 16          # has_residual => Cin == Cout, stride 1
    KH = KW = 3

    k1, k2, k3, k4, k5, k6, k7 = jax.random.split(key, 7)
    x = jax.random.normal(k1, (N, C, H, W), jnp.float32)
    weight = 0.1 * jax.random.normal(k2, (C, C, KH, KW), jnp.float32)
    gamma = 1.0 + 0.1 * jax.random.normal(k3, (C,), jnp.float32)
    beta = 0.1 * jax.random.normal(k4, (C,), jnp.float32)
    running_mean = 0.05 * jax.random.normal(k5, (C,), jnp.float32)
    running_var = jnp.abs(1.0 + 0.1 * jax.random.normal(k6, (C,), jnp.float32))

    # tile_h=8 -> 2 row tiles per image, exercising the spatial grid axis.
    out = variable_length_conv_bn_act(
        x, weight, gamma, beta, running_mean, running_var,
        has_residual=True, tile_h=8)
    out = jax.block_until_ready(out)

    ref = _reference(x, weight, gamma, beta, running_mean, running_var)
    assert out.shape == ref.shape == (N, C, H, W)
    # Tolerance accounts for bf16 activations/weights/residual in the MXU path
    # (f32 accumulation) plus the bf16 output cast.
    err = float(jnp.max(jnp.abs(out.astype(jnp.float32) - ref)))
    assert err < 7.5e-2, f"dense mismatch vs reference: max abs err {err}"

    # Variable-length (list) dispatch: different spatial sizes per element.
    x2 = jax.random.normal(k7, (1, C, 8, 8), jnp.float32)
    outs = variable_length_conv_bn_act(
        [x, x2], weight, gamma, beta, running_mean, running_var,
        has_residual=True)
    outs = jax.block_until_ready(outs)
    assert isinstance(outs, list) and len(outs) == 2
    assert outs[0].shape == (N, C, H, W) and outs[1].shape == (1, C, 8, 8)
    ref2 = _reference(x2, weight, gamma, beta, running_mean, running_var)
    err2 = float(jnp.max(jnp.abs(outs[1].astype(jnp.float32) - ref2)))
    assert err2 < 7.5e-2, f"varlen mismatch vs reference: max abs err {err2}"

    print("KERNEL_OK")
</pallas_src>

<mosaic_0001>
module attributes {stable_mosaic.version = 11 : i64} {
  func.func @conv_bn_act_kernel(%arg0: i32, %arg1: i32, %arg2: memref<1x18x18x8xbf16, #tpu.memory_space<vmem>>, %arg3: memref<72x8xbf16, #tpu.memory_space<vmem>>, %arg4: memref<1x8xf32, #tpu.memory_space<vmem>>, %arg5: memref<1x8xf32, #tpu.memory_space<vmem>>, %arg6: memref<1x8x16x8xbf16, #tpu.memory_space<vmem>>) attributes {dimension_semantics = [#tpu.dimension_semantics<parallel>, #tpu.dimension_semantics<parallel>], iteration_bounds = array<i64: 2, 2>, scalar_prefetch = 0 : i64, scratch_operands = 0 : i64, tpu.core_type = #tpu.core_type<tc>, window_params = [{transform_indices = @transform_0, window_bounds = array<i64: 1, 18, 18, 8>}, {pipeline_mode = #tpu.pipeline_mode<synchronous>, transform_indices = @transform_1, window_bounds = array<i64: 72, 8>}, {pipeline_mode = #tpu.pipeline_mode<synchronous>, transform_indices = @transform_2, window_bounds = array<i64: 1, 8>}, {pipeline_mode = #tpu.pipeline_mode<synchronous>, transform_indices = @transform_3, window_bounds = array<i64: 1, 8>}, {transform_indices = @transform_4, window_bounds = array<i64: 1, 8, 16, 8>}]} {
    %c8_i32 = arith.constant 8 : i32
    %0 = arith.muli %arg1, %c8_i32 : i32
    %1 = tpu.assume_multiple %0, 8 : i32
    %c0_i32 = arith.constant 0 : i32
    %2 = arith.addi %1, %c0_i32 : i32
    %c0 = arith.constant 0 : index
    %3 = arith.index_cast %2 : i32 to index
    %c0_0 = arith.constant 0 : index
    %c0_1 = arith.constant 0 : index
    %4 = vector.load %arg2[%c0, %3, %c0_0, %c0_1] : memref<1x18x18x8xbf16, #tpu.memory_space<vmem>>, vector<1x8x16x8xbf16>
    %5 = vector.shape_cast %4 : vector<1x8x16x8xbf16> to vector<8x16x8xbf16>
    %6 = vector.shape_cast %5 : vector<8x16x8xbf16> to vector<128x8xbf16>
    %c0_i32_2 = arith.constant 0 : i32
    %7 = arith.addi %1, %c0_i32_2 : i32
    %c0_3 = arith.constant 0 : index
    %8 = arith.index_cast %7 : i32 to index
    %c1 = arith.constant 1 : index
    %c0_4 = arith.constant 0 : index
    %9 = vector.load %arg2[%c0_3, %8, %c1, %c0_4] : memref<1x18x18x8xbf16, #tpu.memory_space<vmem>>, vector<1x8x16x8xbf16>
    %10 = vector.shape_cast %9 : vector<1x8x16x8xbf16> to vector<8x16x8xbf16>
    %11 = vector.shape_cast %10 : vector<8x16x8xbf16> to vector<128x8xbf16>
    %c0_i32_5 = arith.constant 0 : i32
    %12 = arith.addi %1, %c0_i32_5 : i32
    %c0_6 = arith.constant 0 : index
    %13 = arith.index_cast %12 : i32 to index
    %c2 = arith.constant 2 : index
    %c0_7 = arith.constant 0 : index
    %14 = vector.load %arg2[%c0_6, %13, %c2, %c0_7] : memref<1x18x18x8xbf16, #tpu.memory_space<vmem>>, vector<1x8x16x8xbf16>
    %15 = vector.shape_cast %14 : vector<1x8x16x8xbf16> to vector<8x16x8xbf16>
    %16 = vector.shape_cast %15 : vector<8x16x8xbf16> to vector<128x8xbf16>
    %c1_i32 = arith.constant 1 : i32
    %17 = arith.addi %1, %c1_i32 : i32
    %c0_8 = arith.constant 0 : index
    %18 = arith.index_cast %17 : i32 to index
    %c0_9 = arith.constant 0 : index
    %c0_10 = arith.constant 0 : index
    %19 = vector.load %arg2[%c0_8, %18, %c0_9, %c0_10] : memref<1x18x18x8xbf16, #tpu.memory_space<vmem>>, vector<1x8x16x8xbf16>
    %20 = vector.shape_cast %19 : vector<1x8x16x8xbf16> to vector<8x16x8xbf16>
    %21 = vector.shape_cast %20 : vector<8x16x8xbf16> to vector<128x8xbf16>
    %c1_i32_11 = arith.constant 1 : i32
    %22 = arith.addi %1, %c1_i32_11 : i32
    %c0_12 = arith.constant 0 : index
    %23 = arith.index_cast %22 : i32 to index
    %c1_13 = arith.constant 1 : index
    %c0_14 = arith.constant 0 : index
    %24 = vector.load %arg2[%c0_12, %23, %c1_13, %c0_14] : memref<1x18x18x8xbf16, #tpu.memory_space<vmem>>, vector<1x8x16x8xbf16>
    %25 = vector.shape_cast %24 : vector<1x8x16x8xbf16> to vector<8x16x8xbf16>
    %26 = vector.shape_cast %25 : vector<8x16x8xbf16> to vector<128x8xbf16>
    %c1_i32_15 = arith.constant 1 : i32
    %27 = arith.addi %1, %c1_i32_15 : i32
    %c0_16 = arith.constant 0 : index
    %28 = arith.index_cast %27 : i32 to index
    %c2_17 = arith.constant 2 : index
    %c0_18 = arith.constant 0 : index
    %29 = vector.load %arg2[%c0_16, %28, %c2_17, %c0_18] : memref<1x18x18x8xbf16, #tpu.memory_space<vmem>>, vector<1x8x16x8xbf16>
    %30 = vector.shape_cast %29 : vector<1x8x16x8xbf16> to vector<8x16x8xbf16>
    %31 = vector.shape_cast %30 : vector<8x16x8xbf16> to vector<128x8xbf16>
    %c2_i32 = arith.constant 2 : i32
    %32 = arith.addi %1, %c2_i32 : i32
    %c0_19 = arith.constant 0 : index
    %33 = arith.index_cast %32 : i32 to index
    %c0_20 = arith.constant 0 : index
    %c0_21 = arith.constant 0 : index
    %34 = vector.load %arg2[%c0_19, %33, %c0_20, %c0_21] : memref<1x18x18x8xbf16, #tpu.memory_space<vmem>>, vector<1x8x16x8xbf16>
    %35 = vector.shape_cast %34 : vector<1x8x16x8xbf16> to vector<8x16x8xbf16>
    %36 = vector.shape_cast %35 : vector<8x16x8xbf16> to vector<128x8xbf16>
    %c2_i32_22 = arith.constant 2 : i32
    %37 = arith.addi %1, %c2_i32_22 : i32
    %c0_23 = arith.constant 0 : index
    %38 = arith.index_cast %37 : i32 to index
    %c1_24 = arith.constant 1 : index
    %c0_25 = arith.constant 0 : index
    %39 = vector.load %arg2[%c0_23, %38, %c1_24, %c0_25] : memref<1x18x18x8xbf16, #tpu.memory_space<vmem>>, vector<1x8x16x8xbf16>
    %40 = vector.shape_cast %39 : vector<1x8x16x8xbf16> to vector<8x16x8xbf16>
    %41 = vector.shape_cast %40 : vector<8x16x8xbf16> to vector<128x8xbf16>
    %c2_i32_26 = arith.constant 2 : i32
    %42 = arith.addi %1, %c2_i32_26 : i32
    %c0_27 = arith.constant 0 : index
    %43 = arith.index_cast %42 : i32 to index
    %c2_28 = arith.constant 2 : index
    %c0_29 = arith.constant 0 : index
    %44 = vector.load %arg2[%c0_27, %43, %c2_28, %c0_29] : memref<1x18x18x8xbf16, #tpu.memory_space<vmem>>, vector<1x8x16x8xbf16>
    %45 = vector.shape_cast %44 : vector<1x8x16x8xbf16> to vector<8x16x8xbf16>
    %46 = vector.shape_cast %45 : vector<8x16x8xbf16> to vector<128x8xbf16>
    %47 = tpu.concatenate %6, %11, %16, %21, %26, %31, %36, %41, %46 in 1 : vector<128x8xbf16>, vector<128x8xbf16>, vector<128x8xbf16>, vector<128x8xbf16>, vector<128x8xbf16>, vector<128x8xbf16>, vector<128x8xbf16>, vector<128x8xbf16>, vector<128x8xbf16> -> vector<128x72xbf16>
    %c0_30 = arith.constant 0 : index
    %c0_31 = arith.constant 0 : index
    %48 = vector.load %arg3[%c0_30, %c0_31] : memref<72x8xbf16, #tpu.memory_space<vmem>>, vector<72x8xbf16>
    %cst = arith.constant dense<0.000000e+00> : vector<128x8xf32>
    %49 = tpu.matmul %47, %48, %cst {dimension_numbers = #tpu.dot_dimension_numbers<[1], [0], [0], [1], [0, 0, 1, 1], [], []>} : vector<128x72xbf16>, vector<72x8xbf16>, vector<128x8xf32> -> vector<128x8xf32>
    %c0_32 = arith.constant 0 : index
    %c0_33 = arith.constant 0 : index
    %50 = vector.load %arg4[%c0_32, %c0_33] : memref<1x8xf32, #tpu.memory_space<vmem>>, vector<1x8xf32>
    %51 = vector.broadcast %50 : vector<1x8xf32> to vector<128x8xf32>
    %52 = arith.mulf %49, %51 : vector<128x8xf32>
    %c0_34 = arith.constant 0 : index
    %c0_35 = arith.constant 0 : index
    %53 = vector.load %arg5[%c0_34, %c0_35] : memref<1x8xf32, #tpu.memory_space<vmem>>, vector<1x8xf32>
    %54 = vector.broadcast %53 : vector<1x8xf32> to vector<128x8xf32>
    %55 = arith.addf %52, %54 : vector<128x8xf32>
    %56 = arith.negf %55 : vector<128x8xf32>
    %57 = math.exp %56 : vector<128x8xf32>
    %cst_36 = arith.constant 1.000000e+00 : f32
    %58 = vector.broadcast %cst_36 : f32 to vector<128x8xf32>
    %59 = arith.addf %58, %57 : vector<128x8xf32>
    %60 = arith.divf %58, %59 : vector<128x8xf32>
    %61 = arith.mulf %55, %60 : vector<128x8xf32>
    %c1_i32_37 = arith.constant 1 : i32
    %62 = arith.addi %1, %c1_i32_37 : i32
    %c0_38 = arith.constant 0 : index
    %63 = arith.index_cast %62 : i32 to index
    %c1_39 = arith.constant 1 : index
    %c0_40 = arith.constant 0 : index
    %64 = vector.load %arg2[%c0_38, %63, %c1_39, %c0_40] : memref<1x18x18x8xbf16, #tpu.memory_space<vmem>>, vector<1x8x16x8xbf16>
    %65 = vector.shape_cast %64 : vector<1x8x16x8xbf16> to vector<8x16x8xbf16>
    %66 = arith.extf %65 : vector<8x16x8xbf16> to vector<8x16x8xf32>
    %67 = vector.shape_cast %66 : vector<8x16x8xf32> to vector<128x8xf32>
    %68 = arith.addf %61, %67 : vector<128x8xf32>
    %69 = vector.shape_cast %68 : vector<128x8xf32> to vector<8x16x8xf32>
    %70 = arith.truncf %69 : vector<8x16x8xf32> to vector<8x16x8xbf16>
    %c0_41 = arith.constant 0 : index
    %c0_42 = arith.constant 0 : index
    %c0_43 = arith.constant 0 : index
    %c0_44 = arith.constant 0 : index
    %71 = vector.load %arg6[%c0_41, %c0_42, %c0_43, %c0_44] : memref<1x8x16x8xbf16, #tpu.memory_space<vmem>>, vector<1x8x16x8xbf16>
    %72 = vector.shape_cast %71 : vector<1x8x16x8xbf16> to vector<8x16x8xbf16>
    %73 = vector.shape_cast %70 : vector<8x16x8xbf16> to vector<1x8x16x8xbf16>
    tpu.vector_store %arg6[%c0_41, %c0_42, %c0_43, %c0_44], %73 {strides = array<i32>} : memref<1x8x16x8xbf16, #tpu.memory_space<vmem>>, vector<1x8x16x8xbf16>,
    return
  }
  func.func @transform_0(%arg0: i32, %arg1: i32) -> (i32, i32, i32, i32) {
    %c0_i32 = arith.constant 0 : i32
    %c0_i32_0 = arith.constant 0 : i32
    %c0_i32_1 = arith.constant 0 : i32
    %c0_i32_2 = arith.constant 0 : i32
    return %arg0, %c0_i32, %c0_i32_0, %c0_i32_1 : i32, i32, i32, i32
  }
  func.func @transform_1(%arg0: i32, %arg1: i32) -> (i32, i32) {
    %c0_i32 = arith.constant 0 : i32
    %c0_i32_0 = arith.constant 0 : i32
    %c0_i32_1 = arith.constant 0 : i32
    return %c0_i32, %c0_i32_0 : i32, i32
  }
  func.func @transform_2(%arg0: i32, %arg1: i32) -> (i32, i32) {
    %c0_i32 = arith.constant 0 : i32
    %c0_i32_0 = arith.constant 0 : i32
    %c0_i32_1 = arith.constant 0 : i32
    return %c0_i32, %c0_i32_0 : i32, i32
  }
  func.func @transform_3(%arg0: i32, %arg1: i32) -> (i32, i32) {
    %c0_i32 = arith.constant 0 : i32
    %c0_i32_0 = arith.constant 0 : i32
    %c0_i32_1 = arith.constant 0 : i32
    return %c0_i32, %c0_i32_0 : i32, i32
  }
  func.func @transform_4(%arg0: i32, %arg1: i32) -> (i32, i32, i32, i32) {
    %c0_i32 = arith.constant 0 : i32
    %c0_i32_0 = arith.constant 0 : i32
    %c0_i32_1 = arith.constant 0 : i32
    return %arg0, %arg1, %c0_i32, %c0_i32_0 : i32, i32, i32, i32
  }
}

</mosaic_0001>

<llo_original>
// kernel: tpu_custom_call.1
$region0: #{tpu_custom_call.1}
  #allocation0 [shape = 'u32[]', space=smem, size = 0x4, offset = 0x4, fixed_abs, tag = 'smem constant byte address 0x4 - core index']
  #allocation1 [shape = 'u32[144,128]{1,0:T(1,128)}', space=vmem, size = 0x12000, scoped, tag = 'internal scratch']
  %s0 = inlined_call_operand.vmem [shape: bf16[2,18,18,8], index: 0, kind: input, shape index: {}]
  %s1 = inlined_call_operand.vmem [shape: bf16[72,8], index: 1, kind: input, shape index: {}]
  %s2 = inlined_call_operand.vmem [shape: f32[1,8], index: 2, kind: input, shape index: {}]
  %s3 = inlined_call_operand.vmem [shape: f32[1,8], index: 3, kind: input, shape index: {}]
  %s4 = inlined_call_operand.vmem [shape: bf16[2,16,16,8], index: 4, kind: output, shape index: {}]
  %s5 = sld [smem:[#allocation0]]
  $region49: #{tpu_custom_call.1} parent=0
    _
  %s7 = ssub.s32 1, %s5
  %s8 = scalar_select 0, %s7, %s5
  loop: start=0, step=1, limit=6
  $region2: #{tpu_custom_call.1} parent=0 // loop_pre_header
    _
  $region3: #{tpu_custom_call.1} parent=0 // loop_header
    %s10 = sphi 0, %s14
    %p11 = scmp.ge.s32.totalorder %s10, 6
    %s17 = sphi 0, %s29
    %s18 = sphi 0, %s25
    %s19 = sphi 0, %s17
    %s20 = sphi 0, %s18
    %s21 = sphi 0, %s19
    %s22 = sphi 0, %s20
    %s32 = sphi 0, %s34
    %s35 = sphi 0, %s32
    %s36 = sphi 0, %s35
    %s52 = sphi 0, %s36
    %s56 = sphi 0, %s56
    %s58 = sphi 0, %s56
    %s59 = sphi 0, %s58
    %s73 = sphi 0, %s59
    %s77 = sphi 0, %s77
    %s79 = sphi 0, %s77
    %s80 = sphi 0, %s79
    %s94 = sphi 0, %s80
    %s98 = sphi 0, %s98
    %s100 = sphi 0, %s98
    %s101 = sphi 0, %s100
    %s115 = sphi 0, %s101
    %s123 = sphi 0, %s125
    %s126 = sphi 0, %s123
    %s127 = sphi 0, %s126
    %s143 = sphi 0, %s127
  $region4: #{tpu_custom_call.1} parent=0 // loop_header_branch
    %13 = sbr.rel (%p11) target = $region8
  $region5: #{tpu_custom_call.1} parent=0 // loop_body
    %s15 = ssub.s32 %s10, 1
    %s16 = ssub.s32 %s10, 2
    %s23 = sadd.s32 1, %s18
    %p24 = scmp.ge.s32.totalorder %s23, 2
    %s25 = scalar_select %p24, 0, %s23
    %s26 = sadd.s32 1, %s17
    %s27 = scalar_select %p24, %s26, %s17
    %p28 = scmp.ge.s32.totalorder %s27, 2
    %s29 = scalar_select %p28, 0, %s27
    %s30 = ssub.s32 %s17, %s29
    %p31 = scmp.eq.s32.totalorder %s30, 0
    %s33 = sadd.s32 %s32, 1
    %s34 = scalar_select %p31, %s32, %s33
    %p37 = pneg %p31
    %p38 = scmp.eq.s32.totalorder %s10, 3
    %p39 = por %p37, %p38
    %p40 = scmp.ne.s32.totalorder %s32, %s35
    %p41 = scmp.eq.s32.totalorder %s10, 0
    %p42 = por %p40, %p41
    %p43 = scmp.ne.s32.totalorder %s32, %s35
    %p44 = scmp.eq.s32.totalorder %s15, 3
    %p45 = por %p43, %p44
    %p46 = scmp.ne.s32.totalorder %s35, %s36
    %p47 = scmp.eq.s32.totalorder %s15, 0
    %p48 = por %p46, %p47
    %p49 = scmp.ne.s32.totalorder %s35, %s36
    %p50 = scmp.eq.s32.totalorder %s16, 3
    %p51 = por %p49, %p50
    %p53 = scmp.ne.s32.totalorder %s36, %s52
    %p54 = scmp.eq.s32.totalorder %s16, 0
    %p55 = por %p53, %p54
    %s57 = sadd.s32 %s56, 1
    %p60 = scmp.eq.s32.totalorder %s10, 3
    %p61 = scmp.ne.s32.totalorder %s56, %s58
    %p62 = scmp.eq.s32.totalorder %s10, 0
    %p63 = por %p61, %p62
    %p64 = scmp.ne.s32.totalorder %s56, %s58
    %p65 = scmp.eq.s32.totalorder %s15, 3
    %p66 = por %p64, %p65
    %p67 = scmp.ne.s32.totalorder %s58, %s59
    %p68 = scmp.eq.s32.totalorder %s15, 0
    %p69 = por %p67, %p68
    %p70 = scmp.ne.s32.totalorder %s58, %s59
    %p71 = scmp.eq.s32.totalorder %s16, 3
    %p72 = por %p70, %p71
    %p74 = scmp.ne.s32.totalorder %s59, %s73
    %p75 = scmp.eq.s32.totalorder %s16, 0
    %p76 = por %p74, %p75
    %s78 = sadd.s32 %s77, 1
    %p81 = scmp.eq.s32.totalorder %s10, 3
    %p82 = scmp.ne.s32.totalorder %s77, %s79
    %p83 = scmp.eq.s32.totalorder %s10, 0
    %p84 = por %p82, %p83
    %p85 = scmp.ne.s32.totalorder %s77, %s79
    %p86 = scmp.eq.s32.totalorder %s15, 3
    %p87 = por %p85, %p86
    %p88 = scmp.ne.s32.totalorder %s79, %s80
    %p89 = scmp.eq.s32.totalorder %s15, 0
    %p90 = por %p88, %p89
    %p91 = scmp.ne.s32.totalorder %s79, %s80
    %p92 = scmp.eq.s32.totalorder %s16, 3
    %p93 = por %p91, %p92
    %p95 = scmp.ne.s32.totalorder %s80, %s94
    %p96 = scmp.eq.s32.totalorder %s16, 0
    %p97 = por %p95, %p96
    %s99 = sadd.s32 %s98, 1
    %p102 = scmp.eq.s32.totalorder %s10, 3
    %p103 = scmp.ne.s32.totalorder %s98, %s100
    %p104 = scmp.eq.s32.totalorder %s10, 0
    %p105 = por %p103, %p104
    %p106 = scmp.ne.s32.totalorder %s98, %s100
    %p107 = scmp.eq.s32.totalorder %s15, 3
    %p108 = por %p106, %p107
    %p109 = scmp.ne.s32.totalorder %s100, %s101
    %p110 = scmp.eq.s32.totalorder %s15, 0
    %p111 = por %p109, %p110
    %p112 = scmp.ne.s32.totalorder %s100, %s101
    %p113 = scmp.eq.s32.totalorder %s16, 3
    %p114 = por %p112, %p113
    %p116 = scmp.ne.s32.totalorder %s101, %s115
    %p117 = scmp.eq.s32.totalorder %s16, 0
    %p118 = por %p116, %p117
    %s119 = ssub.s32 %s17, %s29
    %s120 = ssub.s32 %s18, %s25
    %s121 = sor.u32 %s119, %s120
    %p122 = scmp.eq.s32.totalorder %s121, 0
    %s124 = sadd.s32 %s123, 1
    %s125 = scalar_select %p122, %s123, %s124
    %p128 = pneg %p122
    %p129 = scmp.eq.s32.totalorder %s10, 3
    %p130 = por %p128, %p129
    %p131 = scmp.ne.s32.totalorder %s123, %s126
    %p132 = scmp.eq.s32.totalorder %s10, 0
    %p133 = por %p131, %p132
    %p134 = scmp.ne.s32.totalorder %s123, %s126
    %p135 = scmp.eq.s32.totalorder %s15, 3
    %p136 = por %p134, %p135
    %p137 = scmp.ne.s32.totalorder %s126, %s127
    %p138 = scmp.eq.s32.totalorder %s15, 0
    %p139 = por %p137, %p138
    %p140 = scmp.ne.s32.totalorder %s126, %s127
    %p141 = scmp.eq.s32.totalorder %s16, 3
    %p142 = por %p140, %p141
    %p144 = scmp.ne.s32.totalorder %s127, %s143
    %p145 = scmp.eq.s32.totalorder %s16, 0
    %p146 = por %p144, %p145
    %p147 = scmp.le.s32.totalorder 1, %s10
    %p148 = scmp.lt.s32.totalorder %s10, 5
    %p149 = pnand %p147, %p148
    %p150 = pneg %p149
    // Predicated region
    $region9: #{tpu_custom_call.1} parent=5 // pred_check
      _
    $region10: #{tpu_custom_call.1} parent=5 // pred_check_branch
      %152 = sbr.rel (%p149) target = $region12
    $region11: #{tpu_custom_call.1} parent=5 // pred_region
      %s153 = ssub.s32 %s10, 1
      // Predicated region
      $region13: #{tpu_custom_call.1} parent=11 // pred_check
        %p154 = pneg %p69
      $region14: #{tpu_custom_call.1} parent=11 // pred_check_branch
        %156 = sbr.rel (%p154) target = $region16
      $region15: #{tpu_custom_call.1} parent=11 // pred_region
        _
      $region16: #{tpu_custom_call.1} parent=11 // pred_fallthru
        _
      // Predicated region
      $region17: #{tpu_custom_call.1} parent=11 // pred_check
        %p157 = pneg %p90
      $region18: #{tpu_custom_call.1} parent=11 // pred_check_branch
        %159 = sbr.rel (%p157) target = $region20
      $region19: #{tpu_custom_call.1} parent=11 // pred_region
        _
      $region20: #{tpu_custom_call.1} parent=11 // pred_fallthru
        _
      // Predicated region
      $region21: #{tpu_custom_call.1} parent=11 // pred_check
        %p160 = pneg %p111
      $region22: #{tpu_custom_call.1} parent=11 // pred_check_branch
        %162 = sbr.rel (%p160) target = $region24
      $region23: #{tpu_custom_call.1} parent=11 // pred_region
        _
      $region24: #{tpu_custom_call.1} parent=11 // pred_fallthru
        _
    $region12: #{tpu_custom_call.1} parent=5 // pred_fallthru
      _
    %p163 = scmp.lt.s32.totalorder %s10, 4
    // Predicated region
    $region25: #{tpu_custom_call.1} parent=5 // pred_check
      %p164 = pneg %p163
    $region26: #{tpu_custom_call.1} parent=5 // pred_check_branch
      %166 = sbr.rel (%p164) target = $region28
    $region27: #{tpu_custom_call.1} parent=5 // pred_region
      // Predicated region
      $region29: #{tpu_custom_call.1} parent=27 // pred_check
        %p167 = pneg %p42
      $region30: #{tpu_custom_call.1} parent=27 // pred_check_branch
        %169 = sbr.rel (%p167) target = $region32
      $region31: #{tpu_custom_call.1} parent=27 // pred_region
        %p170 = scmp.lt.s32.totalorder %s17, 1
        %s171 = scalar_select %p170, %s17, 1
        %s172 = smul.addr %s171, 54
        %s173 = smul.addr %s172, 4
        %s174 = scalar_lea.vmem %s0, %s173
      $region32: #{tpu_custom_call.1} parent=27 // pred_fallthru
        _
    $region28: #{tpu_custom_call.1} parent=5 // pred_fallthru
      _
    %p175 = scmp.le.s32.totalorder 1, %s10
    %p176 = scmp.lt.s32.totalorder %s10, 5
    %p177 = pnand %p175, %p176
    %p178 = pneg %p177
    // Predicated region
    $region33: #{tpu_custom_call.1} parent=5 // pred_check
      _
    $region34: #{tpu_custom_call.1} parent=5 // pred_check_branch
      %180 = sbr.rel (%p177) target = $region36
    $region35: #{tpu_custom_call.1} parent=5 // pred_region
      %s181 = ssub.s32 %s10, 1
      %p182 = scmp.lt.s32.totalorder %s19, 1
      %s183 = scalar_select %p182, %s19, 1
      %s184 = smul.addr %s183, 54
      %s185 = smul.addr %s184, 4
      %s186 = scalar_lea.vmem %s0, %s185
      %p187 = pneg %p48
      %p188 = pneg %p45
      %p189 = pneg %p69
      %p190 = pneg %p66
      %p191 = pneg %p90
      %p192 = pneg %p87
      %p193 = pneg %p111
      %p194 = pneg %p108
      %p195 = pneg %p139
      %p196 = pneg %p136
      %s197 = smul.u32 8, %s20
      %p198 = scmp.lt.s32.totalorder %s19, 1
      %s199 = scalar_select %p198, %s19, 1
      %p200 = scmp.lt.s32.totalorder %s197, 15
      %s201 = scalar_select %p200, %s197, 15
      %s202 = smul.addr %s201, 2
      %s203 = smul.addr %s199, 32
      %s204 = sadd.s32 %s202, %s203
      %s205 = smul.addr %s204, 4
      %s206 = scalar_lea.vmem %s4, %s205
      %p207 = scmp.lt.s32.totalorder %s19, 1
      %s208 = scalar_select %p207, %s19, 1
      %s209 = smul.addr %s208, 54
      %s210 = smul.addr %s209, 4
      %s211 = scalar_lea.vmem %s0, %s210
      %s212 = smul.u32 8, %s20
      %p213 = scmp.lt.s32.totalorder %s19, 1
      %s214 = scalar_select %p213, %s19, 1
      %p215 = scmp.lt.s32.totalorder %s212, 15
      %s216 = scalar_select %p215, %s212, 15
      %s217 = smul.addr %s216, 2
      %s218 = smul.addr %s214, 32
      %s219 = sadd.s32 %s217, %s218
      %s220 = smul.addr %s219, 4
      %s221 = scalar_lea.vmem %s4, %s220
      %s222 = smul.u32 8, %s20
      %s224 = smul.u32 %s20, 8
      %s225 = smul.u32 %s224, 3
      %s226 = smul.addr %s225, 4
      %s227 = scalar_lea.vmem %s211, %s226
      %v228 = vld [vmem:[%s227] sm:$0xf]
      %v229 = vld [vmem:[%s227 + $0x4] sm:$0xf]
      %v230 = vld [vmem:[%s227 + $0xc] sm:$0xf]
      %v231 = vld [vmem:[%s227 + $0x10] sm:$0xf]
      %v232 = vld [vmem:[%s227 + $0x18] sm:$0xf]
      %v233 = vld [vmem:[%s227 + $0x1c] sm:$0xf]
      %v234 = vld [vmem:[%s227 + $0x24] sm:$0xf]
      %v235 = vld [vmem:[%s227 + $0x28] sm:$0xf]
      %v236 = vld [vmem:[%s227 + $0x30] sm:$0xf]
      %v237 = vld [vmem:[%s227 + $0x34] sm:$0xf]
      %v238 = vld [vmem:[%s227 + $0x3c] sm:$0xf]
      %v239 = vld [vmem:[%s227 + $0x40] sm:$0xf]
      %v240 = vld [vmem:[%s227 + $0x48] sm:$0xf]
      %v241 = vld [vmem:[%s227 + $0x4c] sm:$0xf]
      %v242 = vld [vmem:[%s227 + $0x54] sm:$0xf]
      %v243 = vld [vmem:[%s227 + $0x58] sm:$0xf]
      %v244 = vld [vmem:[%s227 + $0x8] sm:$0x1]
      %v245 = vld [vmem:[%s227 + $0x14] sm:$0x1]
      %v246 = vld [vmem:[%s227 + $0x20] sm:$0x1]
      %v247 = vld [vmem:[%s227 + $0x2c] sm:$0x1]
      %v248 = vld [vmem:[%s227 + $0x38] sm:$0x1]
      %v249 = vld [vmem:[%s227 + $0x44] sm:$0x1]
      %v250 = vld [vmem:[%s227 + $0x50] sm:$0x1]
      %v251 = vld [vmem:[%s227 + $0x5c] sm:$0x1]
      %vm252 = vsmask.f32 3328
      %vm253 = vsmask.f32 7440
      %vm254 = vmor %vm252, %vm253
      %v256 = vshrl.u32 %v228, 16
      %v258 = vrot.slane %v256, 4
      %v259 = vshll.u32 %v228, 16
      %v261 = vrot.slane %v259, 5
      %v262 = vor.u32 %v258, %v261
      %v263 = vrot.slane %v262, 4
      %v265 = vshll.u32 %v229, 16
      %v267 = vrot.slane %v265, 5
      %v268 = vsel %vm254, %v263, %v267
      %v269 = vshrl.u32 %v229, 16
      %v271 = vrot.slane %v269, 4
      %v272 = vor.u32 %v271, %v267
      %v273 = vrot.slane %v272, 4
      %v275 = vshll.u32 %v244, 16
      %v277 = vrot.slane %v275, 5
      %v278 = vsel %vm254, %v273, %v277
      %v280 = vshrl.u32 %v230, 16
      %v282 = vrot.slane %v280, 4
      %v283 = vshll.u32 %v230, 16
      %v285 = vrot.slane %v283, 5
      %v286 = vor.u32 %v282, %v285
      %v287 = vrot.slane %v286, 4
      %v289 = vshll.u32 %v231, 16
      %v291 = vrot.slane %v289, 5
      %v292 = vsel %vm254, %v287, %v291
      %v293 = vshrl.u32 %v231, 16
      %v295 = vrot.slane %v293, 4
      %v296 = vor.u32 %v295, %v291
      %v297 = vrot.slane %v296, 4
      %v299 = vshll.u32 %v245, 16
      %v301 = vrot.slane %v299, 5
      %v302 = vsel %vm254, %v297, %v301
      %v304 = vshrl.u32 %v232, 16
      %v306 = vrot.slane %v304, 4
      %v307 = vshll.u32 %v232, 16
      %v309 = vrot.slane %v307, 5
      %v310 = vor.u32 %v306, %v309
      %v311 = vrot.slane %v310, 4
      %v313 = vshll.u32 %v233, 16
      %v315 = vrot.slane %v313, 5
      %v316 = vsel %vm254, %v311, %v315
      %v317 = vshrl.u32 %v233, 16
      %v319 = vrot.slane %v317, 4
      %v320 = vor.u32 %v319, %v315
      %v321 = vrot.slane %v320, 4
      %v323 = vshll.u32 %v246, 16
      %v325 = vrot.slane %v323, 5
      %v326 = vsel %vm254, %v321, %v325
      %v328 = vshrl.u32 %v234, 16
      %v330 = vrot.slane %v328, 4
      %v331 = vshll.u32 %v234, 16
      %v333 = vrot.slane %v331, 5
      %v334 = vor.u32 %v330, %v333
      %v335 = vrot.slane %v334, 4
      %v337 = vshll.u32 %v235, 16
      %v339 = vrot.slane %v337, 5
      %v340 = vsel %vm254, %v335, %v339
      %v341 = vshrl.u32 %v235, 16
      %v343 = vrot.slane %v341, 4
      %v344 = vor.u32 %v343, %v339
      %v345 = vrot.slane %v344, 4
      %v347 = vshll.u32 %v247, 16
      %v349 = vrot.slane %v347, 5
      %v350 = vsel %vm254, %v345, %v349
      %v352 = vshrl.u32 %v236, 16
      %v354 = vrot.slane %v352, 4
      %v355 = vshll.u32 %v236, 16
      %v357 = vrot.slane %v355, 5
      %v358 = vor.u32 %v354, %v357
      %v359 = vrot.slane %v358, 4
      %v361 = vshll.u32 %v237, 16
      %v363 = vrot.slane %v361, 5
      %v364 = vsel %vm254, %v359, %v363
      %v365 = vshrl.u32 %v237, 16
      %v367 = vrot.slane %v365, 4
      %v368 = vor.u32 %v367, %v363
      %v369 = vrot.slane %v368, 4
      %v371 = vshll.u32 %v248, 16
      %v373 = vrot.slane %v371, 5
      %v374 = vsel %vm254, %v369, %v373
      %v376 = vshrl.u32 %v238, 16
      %v378 = vrot.slane %v376, 4
      %v379 = vshll.u32 %v238, 16
      %v381 = vrot.slane %v379, 5
      %v382 = vor.u32 %v378, %v381
      %v383 = vrot.slane %v382, 4
      %v385 = vshll.u32 %v239, 16
      %v387 = vrot.slane %v385, 5
      %v388 = vsel %vm254, %v383, %v387
      %v389 = vshrl.u32 %v239, 16
      %v391 = vrot.slane %v389, 4
      %v392 = vor.u32 %v391, %v387
      %v393 = vrot.slane %v392, 4
      %v395 = vshll.u32 %v249, 16
      %v397 = vrot.slane %v395, 5
      %v398 = vsel %vm254, %v393, %v397
      %v400 = vshrl.u32 %v240, 16
      %v402 = vrot.slane %v400, 4
      %v403 = vshll.u32 %v240, 16
      %v405 = vrot.slane %v403, 5
      %v406 = vor.u32 %v402, %v405
      %v407 = vrot.slane %v406, 4
      %v409 = vshll.u32 %v241, 16
      %v411 = vrot.slane %v409, 5
      %v412 = vsel %vm254, %v407, %v411
      %v413 = vshrl.u32 %v241, 16
      %v415 = vrot.slane %v413, 4
      %v416 = vor.u32 %v415, %v411
      %v417 = vrot.slane %v416, 4
      %v419 = vshll.u32 %v250, 16
      %v421 = vrot.slane %v419, 5
      %v422 = vsel %vm254, %v417, %v421
      %v424 = vshrl.u32 %v242, 16
      %v426 = vrot.slane %v424, 4
      %v427 = vshll.u32 %v242, 16
      %v429 = vrot.slane %v427, 5
      %v430 = vor.u32 %v426, %v429
      %v431 = vrot.slane %v430, 4
      %v433 = vshll.u32 %v243, 16
      %v435 = vrot.slane %v433, 5
      %v436 = vsel %vm254, %v431, %v435
      %v437 = vshrl.u32 %v243, 16
      %v439 = vrot.slane %v437, 4
      %v440 = vor.u32 %v439, %v435
      %v441 = vrot.slane %v440, 4
      %v443 = vshll.u32 %v251, 16
      %v445 = vrot.slane %v443, 5
      %v446 = vsel %vm254, %v441, %v445
      %v447 = vld [vmem:[%s227] sm:$0xe]
      %v448 = vld [vmem:[%s227 + $0xc] sm:$0xe]
      %v449 = vld [vmem:[%s227 + $0x18] sm:$0xe]
      %v450 = vld [vmem:[%s227 + $0x24] sm:$0xe]
      %v451 = vld [vmem:[%s227 + $0x30] sm:$0xe]
      %v452 = vld [vmem:[%s227 + $0x3c] sm:$0xe]
      %v453 = vld [vmem:[%s227 + $0x48] sm:$0xe]
      %v454 = vld [vmem:[%s227 + $0x54] sm:$0xe]
      %vm479 = vcmask 1042432
      %vm480 = vcmask 1046532
      %vm481 = vmor %vm479, %vm480
      %v482 = vrot.slane %v447, 5
      %v483 = vrot.slane %v482, 4
      %v484 = vrot.slane %v229, 5
      %v485 = vsel %vm481, %v483, %v484
      %v486 = vrot.slane %v484, 4
      %v487 = vrot.slane %v244, 5
      %v488 = vsel %vm481, %v486, %v487
      %v489 = vrot.slane %v448, 5
      %v490 = vrot.slane %v489, 4
      %v491 = vrot.slane %v231, 5
      %v492 = vsel %vm481, %v490, %v491
      %v493 = vrot.slane %v491, 4
      %v494 = vrot.slane %v245, 5
      %v495 = vsel %vm481, %v493, %v494
      %v496 = vrot.slane %v449, 5
      %v497 = vrot.slane %v496, 4
      %v498 = vrot.slane %v233, 5
      %v499 = vsel %vm481, %v497, %v498
      %v500 = vrot.slane %v498, 4
      %v501 = vrot.slane %v246, 5
      %v502 = vsel %vm481, %v500, %v501
      %v503 = vrot.slane %v450, 5
      %v504 = vrot.slane %v503, 4
      %v505 = vrot.slane %v235, 5
      %v506 = vsel %vm481, %v504, %v505
      %v507 = vrot.slane %v505, 4
      %v508 = vrot.slane %v247, 5
      %v509 = vsel %vm481, %v507, %v508
      %v510 = vrot.slane %v451, 5
      %v511 = vrot.slane %v510, 4
      %v512 = vrot.slane %v237, 5
      %v513 = vsel %vm481, %v511, %v512
      %v514 = vrot.slane %v512, 4
      %v515 = vrot.slane %v248, 5
      %v516 = vsel %vm481, %v514, %v515
      %v517 = vrot.slane %v452, 5
      %v518 = vrot.slane %v517, 4
      %v519 = vrot.slane %v239, 5
      %v520 = vsel %vm481, %v518, %v519
      %v521 = vrot.slane %v519, 4
      %v522 = vrot.slane %v249, 5
      %v523 = vsel %vm481, %v521, %v522
      %v524 = vrot.slane %v453, 5
      %v525 = vrot.slane %v524, 4
      %v526 = vrot.slane %v241, 5
      %v527 = vsel %vm481, %v525, %v526
      %v528 = vrot.slane %v526, 4
      %v529 = vrot.slane %v250, 5
      %v530 = vsel %vm481, %v528, %v529
      %v531 = vrot.slane %v454, 5
      %v532 = vrot.slane %v531, 4
      %v533 = vrot.slane %v243, 5
      %v534 = vsel %vm481, %v532, %v533
      %v535 = vrot.slane %v533, 4
      %v536 = vrot.slane %v251, 5
      %v537 = vsel %vm481, %v535, %v536
      %s538 = sadd.s32 %s224, 1
      %s539 = smul.u32 %s538, 3
      %s540 = smul.addr %s539, 4
      %s541 = scalar_lea.vmem %s211, %s540
      %v542 = vld [vmem:[%s541] sm:$0xf]
      %v543 = vld [vmem:[%s541 + $0x4] sm:$0xf]
      %v544 = vld [vmem:[%s541 + $0xc] sm:$0xf]
      %v545 = vld [vmem:[%s541 + $0x10] sm:$0xf]
      %v546 = vld [vmem:[%s541 + $0x18] sm:$0xf]
      %v547 = vld [vmem:[%s541 + $0x1c] sm:$0xf]
      %v548 = vld [vmem:[%s541 + $0x24] sm:$0xf]
      %v549 = vld [vmem:[%s541 + $0x28] sm:$0xf]
      %v550 = vld [vmem:[%s541 + $0x30] sm:$0xf]
      %v551 = vld [vmem:[%s541 + $0x34] sm:$0xf]
      %v552 = vld [vmem:[%s541 + $0x3c] sm:$0xf]
      %v553 = vld [vmem:[%s541 + $0x40] sm:$0xf]
      %v554 = vld [vmem:[%s541 + $0x48] sm:$0xf]
      %v555 = vld [vmem:[%s541 + $0x4c] sm:$0xf]
      %v556 = vld [vmem:[%s541 + $0x54] sm:$0xf]
      %v557 = vld [vmem:[%s541 + $0x58] sm:$0xf]
      %v558 = vld [vmem:[%s541 + $0x8] sm:$0x1]
      %v559 = vld [vmem:[%s541 + $0x14] sm:$0x1]
      %v560 = vld [vmem:[%s541 + $0x20] sm:$0x1]
      %v561 = vld [vmem:[%s541 + $0x2c] sm:$0x1]
      %v562 = vld [vmem:[%s541 + $0x38] sm:$0x1]
      %v563 = vld [vmem:[%s541 + $0x44] sm:$0x1]
      %v564 = vld [vmem:[%s541 + $0x50] sm:$0x1]
      %v565 = vld [vmem:[%s541 + $0x5c] sm:$0x1]
      %v567 = vshrl.u32 %v542, 16
      %v569 = vrot.slane %v567, 4
      %v570 = vshll.u32 %v542, 16
      %v572 = vrot.slane %v570, 5
      %v573 = vor.u32 %v569, %v572
      %v574 = vrot.slane %v573, 4
      %v576 = vshll.u32 %v543, 16
      %v578 = vrot.slane %v576, 5
      %v579 = vsel %vm254, %v574, %v578
      %v580 = vshrl.u32 %v543, 16
      %v582 = vrot.slane %v580, 4
      %v583 = vor.u32 %v582, %v578
      %v584 = vrot.slane %v583, 4
      %v586 = vshll.u32 %v558, 16
      %v588 = vrot.slane %v586, 5
      %v589 = vsel %vm254, %v584, %v588
      %v591 = vshrl.u32 %v544, 16
      %v593 = vrot.slane %v591, 4
      %v594 = vshll.u32 %v544, 16
      %v596 = vrot.slane %v594, 5
      %v597 = vor.u32 %v593, %v596
      %v598 = vrot.slane %v597, 4
      %v600 = vshll.u32 %v545, 16
      %v602 = vrot.slane %v600, 5
      %v603 = vsel %vm254, %v598, %v602
      %v604 = vshrl.u32 %v545, 16
      %v606 = vrot.slane %v604, 4
      %v607 = vor.u32 %v606, %v602
      %v608 = vrot.slane %v607, 4
      %v610 = vshll.u32 %v559, 16
      %v612 = vrot.slane %v610, 5
      %v613 = vsel %vm254, %v608, %v612
      %v615 = vshrl.u32 %v546, 16
      %v617 = vrot.slane %v615, 4
      %v618 = vshll.u32 %v546, 16
      %v620 = vrot.slane %v618, 5
      %v621 = vor.u32 %v617, %v620
      %v622 = vrot.slane %v621, 4
      %v624 = vshll.u32 %v547, 16
      %v626 = vrot.slane %v624, 5
      %v627 = vsel %vm254, %v622, %v626
      %v628 = vshrl.u32 %v547, 16
      %v630 = vrot.slane %v628, 4
      %v631 = vor.u32 %v630, %v626
      %v632 = vrot.slane %v631, 4
      %v634 = vshll.u32 %v560, 16
      %v636 = vrot.slane %v634, 5
      %v637 = vsel %vm254, %v632, %v636
      %v639 = vshrl.u32 %v548, 16
      %v641 = vrot.slane %v639, 4
      %v642 = vshll.u32 %v548, 16
      %v644 = vrot.slane %v642, 5
      %v645 = vor.u32 %v641, %v644
      %v646 = vrot.slane %v645, 4
      %v648 = vshll.u32 %v549, 16
      %v650 = vrot.slane %v648, 5
      %v651 = vsel %vm254, %v646, %v650
      %v652 = vshrl.u32 %v549, 16
      %v654 = vrot.slane %v652, 4
      %v655 = vor.u32 %v654, %v650
      %v656 = vrot.slane %v655, 4
      %v658 = vshll.u32 %v561, 16
      %v660 = vrot.slane %v658, 5
      %v661 = vsel %vm254, %v656, %v660
      %v663 = vshrl.u32 %v550, 16
      %v665 = vrot.slane %v663, 4
      %v666 = vshll.u32 %v550, 16
      %v668 = vrot.slane %v666, 5
      %v669 = vor.u32 %v665, %v668
      %v670 = vrot.slane %v669, 4
      %v672 = vshll.u32 %v551, 16
      %v674 = vrot.slane %v672, 5
      %v675 = vsel %vm254, %v670, %v674
      %v676 = vshrl.u32 %v551, 16
      %v678 = vrot.slane %v676, 4
      %v679 = vor.u32 %v678, %v674
      %v680 = vrot.slane %v679, 4
      %v682 = vshll.u32 %v562, 16
      %v684 = vrot.slane %v682, 5
      %v685 = vsel %vm254, %v680, %v684
      %v687 = vshrl.u32 %v552, 16
      %v689 = vrot.slane %v687, 4
      %v690 = vshll.u32 %v552, 16
      %v692 = vrot.slane %v690, 5
      %v693 = vor.u32 %v689, %v692
      %v694 = vrot.slane %v693, 4
      %v696 = vshll.u32 %v553, 16
      %v698 = vrot.slane %v696, 5
      %v699 = vsel %vm254, %v694, %v698
      %v700 = vshrl.u32 %v553, 16
      %v702 = vrot.slane %v700, 4
      %v703 = vor.u32 %v702, %v698
      %v704 = vrot.slane %v703, 4
      %v706 = vshll.u32 %v563, 16
      %v708 = vrot.slane %v706, 5
      %v709 = vsel %vm254, %v704, %v708
      %v711 = vshrl.u32 %v554, 16
      %v713 = vrot.slane %v711, 4
      %v714 = vshll.u32 %v554, 16
      %v716 = vrot.slane %v714, 5
      %v717 = vor.u32 %v713, %v716
      %v718 = vrot.slane %v717, 4
      %v720 = vshll.u32 %v555, 16
      %v722 = vrot.slane %v720, 5
      %v723 = vsel %vm254, %v718, %v722
      %v724 = vshrl.u32 %v555, 16
      %v726 = vrot.slane %v724, 4
      %v727 = vor.u32 %v726, %v722
      %v728 = vrot.slane %v727, 4
      %v730 = vshll.u32 %v564, 16
      %v732 = vrot.slane %v730, 5
      %v733 = vsel %vm254, %v728, %v732
      %v735 = vshrl.u32 %v556, 16
      %v737 = vrot.slane %v735, 4
      %v738 = vshll.u32 %v556, 16
      %v740 = vrot.slane %v738, 5
      %v741 = vor.u32 %v737, %v740
      %v742 = vrot.slane %v741, 4
      %v744 = vshll.u32 %v557, 16
      %v746 = vrot.slane %v744, 5
      %v747 = vsel %vm254, %v742, %v746
      %v748 = vshrl.u32 %v557, 16
      %v750 = vrot.slane %v748, 4
      %v751 = vor.u32 %v750, %v746
      %v752 = vrot.slane %v751, 4
      %v754 = vshll.u32 %v565, 16
      %v756 = vrot.slane %v754, 5
      %v757 = vsel %vm254, %v752, %v756
      %v758 = vld [vmem:[%s541] sm:$0xe]
      %v759 = vld [vmem:[%s541 + $0xc] sm:$0xe]
      %v760 = vld [vmem:[%s541 + $0x18] sm:$0xe]
      %v761 = vld [vmem:[%s541 + $0x24] sm:$0xe]
      %v762 = vld [vmem:[%s541 + $0x30] sm:$0xe]
      %v763 = vld [vmem:[%s541 + $0x3c] sm:$0xe]
      %v764 = vld [vmem:[%s541 + $0x48] sm:$0xe]
      %v765 = vld [vmem:[%s541 + $0x54] sm:$0xe]
      %v790 = vrot.slane %v758, 5
      %v791 = vrot.slane %v790, 4
      %v792 = vrot.slane %v543, 5
      %v793 = vsel %vm481, %v791, %v792
      %v794 = vrot.slane %v792, 4
      %v795 = vrot.slane %v558, 5
      %v796 = vsel %vm481, %v794, %v795
      %v797 = vrot.slane %v759, 5
      %v798 = vrot.slane %v797, 4
      %v799 = vrot.slane %v545, 5
      %v800 = vsel %vm481, %v798, %v799
      %v801 = vrot.slane %v799, 4
      %v802 = vrot.slane %v559, 5
      %v803 = vsel %vm481, %v801, %v802
      %v804 = vrot.slane %v760, 5
      %v805 = vrot.slane %v804, 4
      %v806 = vrot.slane %v547, 5
      %v807 = vsel %vm481, %v805, %v806
      %v808 = vrot.slane %v806, 4
      %v809 = vrot.slane %v560, 5
      %v810 = vsel %vm481, %v808, %v809
      %v811 = vrot.slane %v761, 5
      %v812 = vrot.slane %v811, 4
      %v813 = vrot.slane %v549, 5
      %v814 = vsel %vm481, %v812, %v813
      %v815 = vrot.slane %v813, 4
      %v816 = vrot.slane %v561, 5
      %v817 = vsel %vm481, %v815, %v816
      %v818 = vrot.slane %v762, 5
      %v819 = vrot.slane %v818, 4
      %v820 = vrot.slane %v551, 5
      %v821 = vsel %vm481, %v819, %v820
      %v822 = vrot.slane %v820, 4
      %v823 = vrot.slane %v562, 5
      %v824 = vsel %vm481, %v822, %v823
      %v825 = vrot.slane %v763, 5
      %v826 = vrot.slane %v825, 4
      %v827 = vrot.slane %v553, 5
      %v828 = vsel %vm481, %v826, %v827
      %v829 = vrot.slane %v827, 4
      %v830 = vrot.slane %v563, 5
      %v831 = vsel %vm481, %v829, %v830
      %v832 = vrot.slane %v764, 5
      %v833 = vrot.slane %v832, 4
      %v834 = vrot.slane %v555, 5
      %v835 = vsel %vm481, %v833, %v834
      %v836 = vrot.slane %v834, 4
      %v837 = vrot.slane %v564, 5
      %v838 = vsel %vm481, %v836, %v837
      %v839 = vrot.slane %v765, 5
      %v840 = vrot.slane %v839, 4
      %v841 = vrot.slane %v557, 5
      %v842 = vsel %vm481, %v840, %v841
      %v843 = vrot.slane %v841, 4
      %v844 = vrot.slane %v565, 5
      %v845 = vsel %vm481, %v843, %v844
      %s846 = sadd.s32 %s224, 2
      %s847 = smul.u32 %s846, 3
      %s848 = smul.addr %s847, 4
      %s849 = scalar_lea.vmem %s211, %s848
      %v850 = vld [vmem:[%s849] sm:$0xf]
      %v851 = vld [vmem:[%s849 + $0x4] sm:$0xf]
      %v852 = vld [vmem:[%s849 + $0xc] sm:$0xf]
      %v853 = vld [vmem:[%s849 + $0x10] sm:$0xf]
      %v854 = vld [vmem:[%s849 + $0x18] sm:$0xf]
      %v855 = vld [vmem:[%s849 + $0x1c] sm:$0xf]
      %v856 = vld [vmem:[%s849 + $0x24] sm:$0xf]
      %v857 = vld [vmem:[%s849 + $0x28] sm:$0xf]
      %v858 = vld [vmem:[%s849 + $0x30] sm:$0xf]
      %v859 = vld [vmem:[%s849 + $0x34] sm:$0xf]
      %v860 = vld [vmem:[%s849 + $0x3c] sm:$0xf]
      %v861 = vld [vmem:[%s849 + $0x40] sm:$0xf]
      %v862 = vld [vmem:[%s849 + $0x48] sm:$0xf]
      %v863 = vld [vmem:[%s849 + $0x4c] sm:$0xf]
      %v864 = vld [vmem:[%s849 + $0x54] sm:$0xf]
      %v865 = vld [vmem:[%s849 + $0x58] sm:$0xf]
      %v866 = vld [vmem:[%s849 + $0x8] sm:$0x1]
      %v867 = vld [vmem:[%s849 + $0x14] sm:$0x1]
      %v868 = vld [vmem:[%s849 + $0x20] sm:$0x1]
      %v869 = vld [vmem:[%s849 + $0x2c] sm:$0x1]
      %v870 = vld [vmem:[%s849 + $0x38] sm:$0x1]
      %v871 = vld [vmem:[%s849 + $0x44] sm:$0x1]
      %v872 = vld [vmem:[%s849 + $0x50] sm:$0x1]
      %v873 = vld [vmem:[%s849 + $0x5c] sm:$0x1]
      %v875 = vshrl.u32 %v850, 16
      %v877 = vrot.slane %v875, 4
      %v878 = vshll.u32 %v850, 16
      %v880 = vrot.slane %v878, 5
      %v881 = vor.u32 %v877, %v880
      %v882 = vrot.slane %v881, 4
      %v884 = vshll.u32 %v851, 16
      %v886 = vrot.slane %v884, 5
      %v887 = vsel %vm254, %v882, %v886
      %v888 = vshrl.u32 %v851, 16
      %v890 = vrot.slane %v888, 4
      %v891 = vor.u32 %v890, %v886
      %v892 = vrot.slane %v891, 4
      %v894 = vshll.u32 %v866, 16
      %v896 = vrot.slane %v894, 5
      %v897 = vsel %vm254, %v892, %v896
      %v899 = vshrl.u32 %v852, 16
      %v901 = vrot.slane %v899, 4
      %v902 = vshll.u32 %v852, 16
      %v904 = vrot.slane %v902, 5
      %v905 = vor.u32 %v901, %v904
      %v906 = vrot.slane %v905, 4
      %v908 = vshll.u32 %v853, 16
      %v910 = vrot.slane %v908, 5
      %v911 = vsel %vm254, %v906, %v910
      %v912 = vshrl.u32 %v853, 16
      %v914 = vrot.slane %v912, 4
      %v915 = vor.u32 %v914, %v910
      %v916 = vrot.slane %v915, 4
      %v918 = vshll.u32 %v867, 16
      %v920 = vrot.slane %v918, 5
      %v921 = vsel %vm254, %v916, %v920
      %v923 = vshrl.u32 %v854, 16
      %v925 = vrot.slane %v923, 4
      %v926 = vshll.u32 %v854, 16
      %v928 = vrot.slane %v926, 5
      %v929 = vor.u32 %v925, %v928
      %v930 = vrot.slane %v929, 4
      %v932 = vshll.u32 %v855, 16
      %v934 = vrot.slane %v932, 5
      %v935 = vsel %vm254, %v930, %v934
      %v936 = vshrl.u32 %v855, 16
      %v938 = vrot.slane %v936, 4
      %v939 = vor.u32 %v938, %v934
      %v940 = vrot.slane %v939, 4
      %v942 = vshll.u32 %v868, 16
      %v944 = vrot.slane %v942, 5
      %v945 = vsel %vm254, %v940, %v944
      %v947 = vshrl.u32 %v856, 16
      %v949 = vrot.slane %v947, 4
      %v950 = vshll.u32 %v856, 16
      %v952 = vrot.slane %v950, 5
      %v953 = vor.u32 %v949, %v952
      %v954 = vrot.slane %v953, 4
      %v956 = vshll.u32 %v857, 16
      %v958 = vrot.slane %v956, 5
      %v959 = vsel %vm254, %v954, %v958
      %v960 = vshrl.u32 %v857, 16
      %v962 = vrot.slane %v960, 4
      %v963 = vor.u32 %v962, %v958
      %v964 = vrot.slane %v963, 4
      %v966 = vshll.u32 %v869, 16
      %v968 = vrot.slane %v966, 5
      %v969 = vsel %vm254, %v964, %v968
      %v971 = vshrl.u32 %v858, 16
      %v973 = vrot.slane %v971, 4
      %v974 = vshll.u32 %v858, 16
      %v976 = vrot.slane %v974, 5
      %v977 = vor.u32 %v973, %v976
      %v978 = vrot.slane %v977, 4
      %v980 = vshll.u32 %v859, 16
      %v982 = vrot.slane %v980, 5
      %v983 = vsel %vm254, %v978, %v982
      %v984 = vshrl.u32 %v859, 16
      %v986 = vrot.slane %v984, 4
      %v987 = vor.u32 %v986, %v982
      %v988 = vrot.slane %v987, 4
      %v990 = vshll.u32 %v870, 16
      %v992 = vrot.slane %v990, 5
      %v993 = vsel %vm254, %v988, %v992
      %v995 = vshrl.u32 %v860, 16
      %v997 = vrot.slane %v995, 4
      %v998 = vshll.u32 %v860, 16
      %v1000 = vrot.slane %v998, 5
      %v1001 = vor.u32 %v997, %v1000
      %v1002 = vrot.slane %v1001, 4
      %v1004 = vshll.u32 %v861, 16
      %v1006 = vrot.slane %v1004, 5
      %v1007 = vsel %vm254, %v1002, %v1006
      %v1008 = vshrl.u32 %v861, 16
      %v1010 = vrot.slane %v1008, 4
      %v1011 = vor.u32 %v1010, %v1006
      %v1012 = vrot.slane %v1011, 4
      %v1014 = vshll.u32 %v871, 16
      %v1016 = vrot.slane %v1014, 5
      %v1017 = vsel %vm254, %v1012, %v1016
      %v1019 = vshrl.u32 %v862, 16
      %v1021 = vrot.slane %v1019, 4
      %v1022 = vshll.u32 %v862, 16
      %v1024 = vrot.slane %v1022, 5
      %v1025 = vor.u32 %v1021, %v1024
      %v1026 = vrot.slane %v1025, 4
      %v1028 = vshll.u32 %v863, 16
      %v1030 = vrot.slane %v1028, 5
      %v1031 = vsel %vm254, %v1026, %v1030
      %v1032 = vshrl.u32 %v863, 16
      %v1034 = vrot.slane %v1032, 4
      %v1035 = vor.u32 %v1034, %v1030
      %v1036 = vrot.slane %v1035, 4
      %v1038 = vshll.u32 %v872, 16
      %v1040 = vrot.slane %v1038, 5
      %v1041 = vsel %vm254, %v1036, %v1040
      %v1043 = vshrl.u32 %v864, 16
      %v1045 = vrot.slane %v1043, 4
      %v1046 = vshll.u32 %v864, 16
      %v1048 = vrot.slane %v1046, 5
      %v1049 = vor.u32 %v1045, %v1048
      %v1050 = vrot.slane %v1049, 4
      %v1052 = vshll.u32 %v865, 16
      %v1054 = vrot.slane %v1052, 5
      %v1055 = vsel %vm254, %v1050, %v1054
      %v1056 = vshrl.u32 %v865, 16
      %v1058 = vrot.slane %v1056, 4
      %v1059 = vor.u32 %v1058, %v1054
      %v1060 = vrot.slane %v1059, 4
      %v1062 = vshll.u32 %v873, 16
      %v1064 = vrot.slane %v1062, 5
      %v1065 = vsel %vm254, %v1060, %v1064
      %v1066 = vld [vmem:[%s849] sm:$0xe]
      %v1067 = vld [vmem:[%s849 + $0xc] sm:$0xe]
      %v1068 = vld [vmem:[%s849 + $0x18] sm:$0xe]
      %v1069 = vld [vmem:[%s849 + $0x24] sm:$0xe]
      %v1070 = vld [vmem:[%s849 + $0x30] sm:$0xe]
      %v1071 = vld [vmem:[%s849 + $0x3c] sm:$0xe]
      %v1072 = vld [vmem:[%s849 + $0x48] sm:$0xe]
      %v1073 = vld [vmem:[%s849 + $0x54] sm:$0xe]
      %v1098 = vrot.slane %v1066, 5
      %v1099 = vrot.slane %v1098, 4
      %v1100 = vrot.slane %v851, 5
      %v1101 = vsel %vm481, %v1099, %v1100
      %v1102 = vrot.slane %v1100, 4
      %v1103 = vrot.slane %v866, 5
      %v1104 = vsel %vm481, %v1102, %v1103
      %v1105 = vrot.slane %v1067, 5
      %v1106 = vrot.slane %v1105, 4
      %v1107 = vrot.slane %v853, 5
      %v1108 = vsel %vm481, %v1106, %v1107
      %v1109 = vrot.slane %v1107, 4
      %v1110 = vrot.slane %v867, 5
      %v1111 = vsel %vm481, %v1109, %v1110
      %v1112 = vrot.slane %v1068, 5
      %v1113 = vrot.slane %v1112, 4
      %v1114 = vrot.slane %v855, 5
      %v1115 = vsel %vm481, %v1113, %v1114
      %v1116 = vrot.slane %v1114, 4
      %v1117 = vrot.slane %v868, 5
      %v1118 = vsel %vm481, %v1116, %v1117
      %v1119 = vrot.slane %v1069, 5
      %v1120 = vrot.slane %v1119, 4
      %v1121 = vrot.slane %v857, 5
      %v1122 = vsel %vm481, %v1120, %v1121
      %v1123 = vrot.slane %v1121, 4
      %v1124 = vrot.slane %v869, 5
      %v1125 = vsel %vm481, %v1123, %v1124
      %v1126 = vrot.slane %v1070, 5
      %v1127 = vrot.slane %v1126, 4
      %v1128 = vrot.slane %v859, 5
      %v1129 = vsel %vm481, %v1127, %v1128
      %v1130 = vrot.slane %v1128, 4
      %v1131 = vrot.slane %v870, 5
      %v1132 = vsel %vm481, %v1130, %v1131
      %v1133 = vrot.slane %v1071, 5
      %v1134 = vrot.slane %v1133, 4
      %v1135 = vrot.slane %v861, 5
      %v1136 = vsel %vm481, %v1134, %v1135
      %v1137 = vrot.slane %v1135, 4
      %v1138 = vrot.slane %v871, 5
      %v1139 = vsel %vm481, %v1137, %v1138
      %v1140 = vrot.slane %v1072, 5
      %v1141 = vrot.slane %v1140, 4
      %v1142 = vrot.slane %v863, 5
      %v1143 = vsel %vm481, %v1141, %v1142
      %v1144 = vrot.slane %v1142, 4
      %v1145 = vrot.slane %v872, 5
      %v1146 = vsel %vm481, %v1144, %v1145
      %v1147 = vrot.slane %v1073, 5
      %v1148 = vrot.slane %v1147, 4
      %v1149 = vrot.slane %v865, 5
      %v1150 = vsel %vm481, %v1148, %v1149
      %v1151 = vrot.slane %v1149, 4
      %v1152 = vrot.slane %v873, 5
      %v1153 = vsel %vm481, %v1151, %v1152
      %v1162 = vunpack.c.l.b16 %v228
      %v1163 = vunpack.c.l.b16 %v229
      %v1164 = vunpack.c.l.b16 %v230
      %v1165 = vunpack.c.l.b16 %v231
      %v1166 = vunpack.c.l.b16 %v232
      %v1167 = vunpack.c.l.b16 %v233
      %v1168 = vunpack.c.l.b16 %v234
      %v1169 = vunpack.c.l.b16 %v235
      %v1170 = vunpack.c.l.b16 %v236
      %v1171 = vunpack.c.l.b16 %v237
      %v1172 = vunpack.c.l.b16 %v238
      %v1173 = vunpack.c.l.b16 %v239
      %v1174 = vunpack.c.l.b16 %v240
      %v1175 = vunpack.c.l.b16 %v241
      %v1176 = vunpack.c.l.b16 %v242
      %v1177 = vunpack.c.l.b16 %v243
      %v1178 = vpack.c.b16 %v1163, %v1162
      %v1179 = vpack.c.b16 %v1165, %v1164
      %v1180 = vpack.c.b16 %v1167, %v1166
      %v1181 = vpack.c.b16 %v1169, %v1168
      %v1182 = vpack.c.b16 %v1171, %v1170
      %v1183 = vpack.c.b16 %v1173, %v1172
      %v1184 = vpack.c.b16 %v1175, %v1174
      %v1185 = vpack.c.b16 %v1177, %v1176
      %v1186 = vunpack.c.l.b16 %v268
      %v1187 = vunpack.c.l.b16 %v278
      %v1188 = vunpack.c.l.b16 %v292
      %v1189 = vunpack.c.l.b16 %v302
      %v1190 = vunpack.c.l.b16 %v316
      %v1191 = vunpack.c.l.b16 %v326
      %v1192 = vunpack.c.l.b16 %v340
      %v1193 = vunpack.c.l.b16 %v350
      %v1194 = vunpack.c.l.b16 %v364
      %v1195 = vunpack.c.l.b16 %v374
      %v1196 = vunpack.c.l.b16 %v388
      %v1197 = vunpack.c.l.b16 %v398
      %v1198 = vunpack.c.l.b16 %v412
      %v1199 = vunpack.c.l.b16 %v422
      %v1200 = vunpack.c.l.b16 %v436
      %v1201 = vunpack.c.l.b16 %v446
      %v1202 = vpack.c.b16 %v1187, %v1186
      %v1203 = vpack.c.b16 %v1189, %v1188
      %v1204 = vpack.c.b16 %v1191, %v1190
      %v1205 = vpack.c.b16 %v1193, %v1192
      %v1206 = vpack.c.b16 %v1195, %v1194
      %v1207 = vpack.c.b16 %v1197, %v1196
      %v1208 = vpack.c.b16 %v1199, %v1198
      %v1209 = vpack.c.b16 %v1201, %v1200
      %1210 = vrot.lane.b32.xlu0 %v1202, 8
      %v1211 = vpop.permute.xlu0 %1210
      %1212 = vrot.lane.b32.xlu0 %v1203, 8
      %v1213 = vpop.permute.xlu0 %1212
      %1214 = vrot.lane.b32.xlu0 %v1204, 8
      %v1215 = vpop.permute.xlu0 %1214
      %1216 = vrot.lane.b32.xlu0 %v1205, 8
      %v1217 = vpop.permute.xlu0 %1216
      %1218 = vrot.lane.b32.xlu0 %v1206, 8
      %v1219 = vpop.permute.xlu0 %1218
      %1220 = vrot.lane.b32.xlu0 %v1207, 8
      %v1221 = vpop.permute.xlu0 %1220
      %1222 = vrot.lane.b32.xlu0 %v1208, 8
      %v1223 = vpop.permute.xlu0 %1222
      %1224 = vrot.lane.b32.xlu0 %v1209, 8
      %v1225 = vpop.permute.xlu0 %1224
      %v1226 = vunpack.c.l.b16 %v485
      %v1227 = vunpack.c.l.b16 %v488
      %v1228 = vunpack.c.l.b16 %v492
      %v1229 = vunpack.c.l.b16 %v495
      %v1230 = vunpack.c.l.b16 %v499
      %v1231 = vunpack.c.l.b16 %v502
      %v1232 = vunpack.c.l.b16 %v506
      %v1233 = vunpack.c.l.b16 %v509
      %v1234 = vunpack.c.l.b16 %v513
      %v1235 = vunpack.c.l.b16 %v516
      %v1236 = vunpack.c.l.b16 %v520
      %v1237 = vunpack.c.l.b16 %v523
      %v1238 = vunpack.c.l.b16 %v527
      %v1239 = vunpack.c.l.b16 %v530
      %v1240 = vunpack.c.l.b16 %v534
      %v1241 = vunpack.c.l.b16 %v537
      %v1242 = vpack.c.b16 %v1227, %v1226
      %v1243 = vpack.c.b16 %v1229, %v1228
      %v1244 = vpack.c.b16 %v1231, %v1230
      %v1245 = vpack.c.b16 %v1233, %v1232
      %v1246 = vpack.c.b16 %v1235, %v1234
      %v1247 = vpack.c.b16 %v1237, %v1236
      %v1248 = vpack.c.b16 %v1239, %v1238
      %v1249 = vpack.c.b16 %v1241, %v1240
      %1250 = vrot.lane.b32.xlu0 %v1242, 16
      %v1251 = vpop.permute.xlu0 %1250
      %1252 = vrot.lane.b32.xlu0 %v1243, 16
      %v1253 = vpop.permute.xlu0 %1252
      %1254 = vrot.lane.b32.xlu0 %v1244, 16
      %v1255 = vpop.permute.xlu0 %1254
      %1256 = vrot.lane.b32.xlu0 %v1245, 16
      %v1257 = vpop.permute.xlu0 %1256
      %1258 = vrot.lane.b32.xlu0 %v1246, 16
      %v1259 = vpop.permute.xlu0 %1258
      %1260 = vrot.lane.b32.xlu0 %v1247, 16
      %v1261 = vpop.permute.xlu0 %1260
      %1262 = vrot.lane.b32.xlu0 %v1248, 16
      %v1263 = vpop.permute.xlu0 %1262
      %1264 = vrot.lane.b32.xlu0 %v1249, 16
      %v1265 = vpop.permute.xlu0 %1264
      %v1274 = vunpack.c.l.b16 %v542
      %v1275 = vunpack.c.l.b16 %v543
      %v1276 = vunpack.c.l.b16 %v544
      %v1277 = vunpack.c.l.b16 %v545
      %v1278 = vunpack.c.l.b16 %v546
      %v1279 = vunpack.c.l.b16 %v547
      %v1280 = vunpack.c.l.b16 %v548
      %v1281 = vunpack.c.l.b16 %v549
      %v1282 = vunpack.c.l.b16 %v550
      %v1283 = vunpack.c.l.b16 %v551
      %v1284 = vunpack.c.l.b16 %v552
      %v1285 = vunpack.c.l.b16 %v553
      %v1286 = vunpack.c.l.b16 %v554
      %v1287 = vunpack.c.l.b16 %v555
      %v1288 = vunpack.c.l.b16 %v556
      %v1289 = vunpack.c.l.b16 %v557
      %v1290 = vpack.c.b16 %v1275, %v1274
      %v1291 = vpack.c.b16 %v1277, %v1276
      %v1292 = vpack.c.b16 %v1279, %v1278
      %v1293 = vpack.c.b16 %v1281, %v1280
      %v1294 = vpack.c.b16 %v1283, %v1282
      %v1295 = vpack.c.b16 %v1285, %v1284
      %v1296 = vpack.c.b16 %v1287, %v1286
      %v1297 = vpack.c.b16 %v1289, %v1288
      %1298 = vrot.lane.b32.xlu0 %v1290, 24
      %v1299 = vpop.permute.xlu0 %1298
      %1300 = vrot.lane.b32.xlu0 %v1291, 24
      %v1301 = vpop.permute.xlu0 %1300
      %1302 = vrot.lane.b32.xlu0 %v1292, 24
      %v1303 = vpop.permute.xlu0 %1302
      %1304 = vrot.lane.b32.xlu0 %v1293, 24
      %v1305 = vpop.permute.xlu0 %1304
      %1306 = vrot.lane.b32.xlu0 %v1294, 24
      %v1307 = vpop.permute.xlu0 %1306
      %1308 = vrot.lane.b32.xlu0 %v1295, 24
      %v1309 = vpop.permute.xlu0 %1308
      %1310 = vrot.lane.b32.xlu0 %v1296, 24
      %v1311 = vpop.permute.xlu0 %1310
      %1312 = vrot.lane.b32.xlu0 %v1297, 24
      %v1313 = vpop.permute.xlu0 %1312
      %v1314 = vunpack.c.l.b16 %v579
      %v1315 = vunpack.c.l.b16 %v589
      %v1316 = vunpack.c.l.b16 %v603
      %v1317 = vunpack.c.l.b16 %v613
      %v1318 = vunpack.c.l.b16 %v627
      %v1319 = vunpack.c.l.b16 %v637
      %v1320 = vunpack.c.l.b16 %v651
      %v1321 = vunpack.c.l.b16 %v661
      %v1322 = vunpack.c.l.b16 %v675
      %v1323 = vunpack.c.l.b16 %v685
      %v1324 = vunpack.c.l.b16 %v699
      %v1325 = vunpack.c.l.b16 %v709
      %v1326 = vunpack.c.l.b16 %v723
      %v1327 = vunpack.c.l.b16 %v733
      %v1328 = vunpack.c.l.b16 %v747
      %v1329 = vunpack.c.l.b16 %v757
      %v1330 = vpack.c.b16 %v1315, %v1314
      %v1331 = vpack.c.b16 %v1317, %v1316
      %v1332 = vpack.c.b16 %v1319, %v1318
      %v1333 = vpack.c.b16 %v1321, %v1320
      %v1334 = vpack.c.b16 %v1323, %v1322
      %v1335 = vpack.c.b16 %v1325, %v1324
      %v1336 = vpack.c.b16 %v1327, %v1326
      %v1337 = vpack.c.b16 %v1329, %v1328
      %1338 = vrot.lane.b32.xlu0 %v1330, 32
      %v1339 = vpop.permute.xlu0 %1338
      %1340 = vrot.lane.b32.xlu0 %v1331, 32
      %v1341 = vpop.permute.xlu0 %1340
      %1342 = vrot.lane.b32.xlu0 %v1332, 32
      %v1343 = vpop.permute.xlu0 %1342
      %1344 = vrot.lane.b32.xlu0 %v1333, 32
      %v1345 = vpop.permute.xlu0 %1344
      %1346 = vrot.lane.b32.xlu0 %v1334, 32
      %v1347 = vpop.permute.xlu0 %1346
      %1348 = vrot.lane.b32.xlu0 %v1335, 32
      %v1349 = vpop.permute.xlu0 %1348
      %1350 = vrot.lane.b32.xlu0 %v1336, 32
      %v1351 = vpop.permute.xlu0 %1350
      %1352 = vrot.lane.b32.xlu0 %v1337, 32
      %v1353 = vpop.permute.xlu0 %1352
      %v1354 = vunpack.c.l.b16 %v793
      %v1355 = vunpack.c.l.b16 %v796
      %v1356 = vunpack.c.l.b16 %v800
      %v1357 = vunpack.c.l.b16 %v803
      %v1358 = vunpack.c.l.b16 %v807
      %v1359 = vunpack.c.l.b16 %v810
      %v1360 = vunpack.c.l.b16 %v814
      %v1361 = vunpack.c.l.b16 %v817
      %v1362 = vunpack.c.l.b16 %v821
      %v1363 = vunpack.c.l.b16 %v824
      %v1364 = vunpack.c.l.b16 %v828
      %v1365 = vunpack.c.l.b16 %v831
      %v1366 = vunpack.c.l.b16 %v835
      %v1367 = vunpack.c.l.b16 %v838
      %v1368 = vunpack.c.l.b16 %v842
      %v1369 = vunpack.c.l.b16 %v845
      %v1370 = vpack.c.b16 %v1355, %v1354
      %v1371 = vpack.c.b16 %v1357, %v1356
      %v1372 = vpack.c.b16 %v1359, %v1358
      %v1373 = vpack.c.b16 %v1361, %v1360
      %v1374 = vpack.c.b16 %v1363, %v1362
      %v1375 = vpack.c.b16 %v1365, %v1364
      %v1376 = vpack.c.b16 %v1367, %v1366
      %v1377 = vpack.c.b16 %v1369, %v1368
      %1378 = vrot.lane.b32.xlu0 %v1370, 40
      %v1379 = vpop.permute.xlu0 %1378
      %1380 = vrot.lane.b32.xlu0 %v1371, 40
      %v1381 = vpop.permute.xlu0 %1380
      %1382 = vrot.lane.b32.xlu0 %v1372, 40
      %v1383 = vpop.permute.xlu0 %1382
      %1384 = vrot.lane.b32.xlu0 %v1373, 40
      %v1385 = vpop.permute.xlu0 %1384
      %1386 = vrot.lane.b32.xlu0 %v1374, 40
      %v1387 = vpop.permute.xlu0 %1386
      %1388 = vrot.lane.b32.xlu0 %v1375, 40
      %v1389 = vpop.permute.xlu0 %1388
      %1390 = vrot.lane.b32.xlu0 %v1376, 40
      %v1391 = vpop.permute.xlu0 %1390
      %1392 = vrot.lane.b32.xlu0 %v1377, 40
      %v1393 = vpop.permute.xlu0 %1392
      %v1402 = vunpack.c.l.b16 %v850
      %v1403 = vunpack.c.l.b16 %v851
      %v1404 = vunpack.c.l.b16 %v852
      %v1405 = vunpack.c.l.b16 %v853
      %v1406 = vunpack.c.l.b16 %v854
      %v1407 = vunpack.c.l.b16 %v855
      %v1408 = vunpack.c.l.b16 %v856
      %v1409 = vunpack.c.l.b16 %v857
      %v1410 = vunpack.c.l.b16 %v858
      %v1411 = vunpack.c.l.b16 %v859
      %v1412 = vunpack.c.l.b16 %v860
      %v1413 = vunpack.c.l.b16 %v861
      %v1414 = vunpack.c.l.b16 %v862
      %v1415 = vunpack.c.l.b16 %v863
      %v1416 = vunpack.c.l.b16 %v864
      %v1417 = vunpack.c.l.b16 %v865
      %v1418 = vpack.c.b16 %v1403, %v1402
      %v1419 = vpack.c.b16 %v1405, %v1404
      %v1420 = vpack.c.b16 %v1407, %v1406
      %v1421 = vpack.c.b16 %v1409, %v1408
      %v1422 = vpack.c.b16 %v1411, %v1410
      %v1423 = vpack.c.b16 %v1413, %v1412
      %v1424 = vpack.c.b16 %v1415, %v1414
      %v1425 = vpack.c.b16 %v1417, %v1416
      %1426 = vrot.lane.b32.xlu0 %v1418, 48
      %v1427 = vpop.permute.xlu0 %1426
      %1428 = vrot.lane.b32.xlu0 %v1419, 48
      %v1429 = vpop.permute.xlu0 %1428
      %1430 = vrot.lane.b32.xlu0 %v1420, 48
      %v1431 = vpop.permute.xlu0 %1430
      %1432 = vrot.lane.b32.xlu0 %v1421, 48
      %v1433 = vpop.permute.xlu0 %1432
      %1434 = vrot.lane.b32.xlu0 %v1422, 48
      %v1435 = vpop.permute.xlu0 %1434
      %1436 = vrot.lane.b32.xlu0 %v1423, 48
      %v1437 = vpop.permute.xlu0 %1436
      %1438 = vrot.lane.b32.xlu0 %v1424, 48
      %v1439 = vpop.permute.xlu0 %1438
      %1440 = vrot.lane.b32.xlu0 %v1425, 48
      %v1441 = vpop.permute.xlu0 %1440
      %v1442 = vunpack.c.l.b16 %v887
      %v1443 = vunpack.c.l.b16 %v897
      %v1444 = vunpack.c.l.b16 %v911
      %v1445 = vunpack.c.l.b16 %v921
      %v1446 = vunpack.c.l.b16 %v935
      %v1447 = vunpack.c.l.b16 %v945
      %v1448 = vunpack.c.l.b16 %v959
      %v1449 = vunpack.c.l.b16 %v969
      %v1450 = vunpack.c.l.b16 %v983
      %v1451 = vunpack.c.l.b16 %v993
      %v1452 = vunpack.c.l.b16 %v1007
      %v1453 = vunpack.c.l.b16 %v1017
      %v1454 = vunpack.c.l.b16 %v1031
      %v1455 = vunpack.c.l.b16 %v1041
      %v1456 = vunpack.c.l.b16 %v1055
      %v1457 = vunpack.c.l.b16 %v1065
      %v1458 = vpack.c.b16 %v1443, %v1442
      %v1459 = vpack.c.b16 %v1445, %v1444
      %v1460 = vpack.c.b16 %v1447, %v1446
      %v1461 = vpack.c.b16 %v1449, %v1448
      %v1462 = vpack.c.b16 %v1451, %v1450
      %v1463 = vpack.c.b16 %v1453, %v1452
      %v1464 = vpack.c.b16 %v1455, %v1454
      %v1465 = vpack.c.b16 %v1457, %v1456
      %1466 = vrot.lane.b32.xlu0 %v1458, 56
      %v1467 = vpop.permute.xlu0 %1466
      %1468 = vrot.lane.b32.xlu0 %v1459, 56
      %v1469 = vpop.permute.xlu0 %1468
      %1470 = vrot.lane.b32.xlu0 %v1460, 56
      %v1471 = vpop.permute.xlu0 %1470
      %1472 = vrot.lane.b32.xlu0 %v1461, 56
      %v1473 = vpop.permute.xlu0 %1472
      %1474 = vrot.lane.b32.xlu0 %v1462, 56
      %v1475 = vpop.permute.xlu0 %1474
      %1476 = vrot.lane.b32.xlu0 %v1463, 56
      %v1477 = vpop.permute.xlu0 %1476
      %1478 = vrot.lane.b32.xlu0 %v1464, 56
      %v1479 = vpop.permute.xlu0 %1478
      %1480 = vrot.lane.b32.xlu0 %v1465, 56
      %v1481 = vpop.permute.xlu0 %1480
      %v1482 = vunpack.c.l.b16 %v1101
      %v1483 = vunpack.c.l.b16 %v1104
      %v1484 = vunpack.c.l.b16 %v1108
      %v1485 = vunpack.c.l.b16 %v1111
      %v1486 = vunpack.c.l.b16 %v1115
      %v1487 = vunpack.c.l.b16 %v1118
      %v1488 = vunpack.c.l.b16 %v1122
      %v1489 = vunpack.c.l.b16 %v1125
      %v1490 = vunpack.c.l.b16 %v1129
      %v1491 = vunpack.c.l.b16 %v1132
      %v1492 = vunpack.c.l.b16 %v1136
      %v1493 = vunpack.c.l.b16 %v1139
      %v1494 = vunpack.c.l.b16 %v1143
      %v1495 = vunpack.c.l.b16 %v1146
      %v1496 = vunpack.c.l.b16 %v1150
      %v1497 = vunpack.c.l.b16 %v1153
      %v1498 = vpack.c.b16 %v1483, %v1482
      %v1499 = vpack.c.b16 %v1485, %v1484
      %v1500 = vpack.c.b16 %v1487, %v1486
      %v1501 = vpack.c.b16 %v1489, %v1488
      %v1502 = vpack.c.b16 %v1491, %v1490
      %v1503 = vpack.c.b16 %v1493, %v1492
      %v1504 = vpack.c.b16 %v1495, %v1494
      %v1505 = vpack.c.b16 %v1497, %v1496
      %1506 = vrot.lane.b32.xlu0 %v1498, 64
      %v1507 = vpop.permute.xlu0 %1506
      %1508 = vrot.lane.b32.xlu0 %v1499, 64
      %v1509 = vpop.permute.xlu0 %1508
      %1510 = vrot.lane.b32.xlu0 %v1500, 64
      %v1511 = vpop.permute.xlu0 %1510
      %1512 = vrot.lane.b32.xlu0 %v1501, 64
      %v1513 = vpop.permute.xlu0 %1512
      %1514 = vrot.lane.b32.xlu0 %v1502, 64
      %v1515 = vpop.permute.xlu0 %1514
      %1516 = vrot.lane.b32.xlu0 %v1503, 64
      %v1517 = vpop.permute.xlu0 %1516
      %1518 = vrot.lane.b32.xlu0 %v1504, 64
      %v1519 = vpop.permute.xlu0 %1518
      %1520 = vrot.lane.b32.xlu0 %v1505, 64
      %v1521 = vpop.permute.xlu0 %1520
      %vm1522 = vcmask 64512
      %v1525 = vsel %vm1522, %v1178, %v1211
      %v1528 = vsel %vm1522, %v1179, %v1213
      %v1531 = vsel %vm1522, %v1180, %v1215
      %v1534 = vsel %vm1522, %v1181, %v1217
      %v1537 = vsel %vm1522, %v1182, %v1219
      %v1540 = vsel %vm1522, %v1183, %v1221
      %v1543 = vsel %vm1522, %v1184, %v1223
      %v1546 = vsel %vm1522, %v1185, %v1225
      %vm1547 = vcmask 130048
      %v1549 = vsel %vm1547, %v1525, %v1251
      %v1551 = vsel %vm1547, %v1528, %v1253
      %v1553 = vsel %vm1547, %v1531, %v1255
      %v1555 = vsel %vm1547, %v1534, %v1257
      %v1557 = vsel %vm1547, %v1537, %v1259
      %v1559 = vsel %vm1547, %v1540, %v1261
      %v1561 = vsel %vm1547, %v1543, %v1263
      %v1563 = vsel %vm1547, %v1546, %v1265
      %vm1564 = vcmask 195584
      %v1566 = vsel %vm1564, %v1549, %v1299
      %v1568 = vsel %vm1564, %v1551, %v1301
      %v1570 = vsel %vm1564, %v1553, %v1303
      %v1572 = vsel %vm1564, %v1555, %v1305
      %v1574 = vsel %vm1564, %v1557, %v1307
      %v1576 = vsel %vm1564, %v1559, %v1309
      %v1578 = vsel %vm1564, %v1561, %v1311
      %v1580 = vsel %vm1564, %v1563, %v1313
      %vm1581 = vcmask 261120
      %v1583 = vsel %vm1581, %v1566, %v1339
      %v1585 = vsel %vm1581, %v1568, %v1341
      %v1587 = vsel %vm1581, %v1570, %v1343
      %v1589 = vsel %vm1581, %v1572, %v1345
      %v1591 = vsel %vm1581, %v1574, %v1347
      %v1593 = vsel %vm1581, %v1576, %v1349
      %v1595 = vsel %vm1581, %v1578, %v1351
      %v1597 = vsel %vm1581, %v1580, %v1353
      %vm1598 = vcmask 326656
      %v1600 = vsel %vm1598, %v1583, %v1379
      %v1602 = vsel %vm1598, %v1585, %v1381
      %v1604 = vsel %vm1598, %v1587, %v1383
      %v1606 = vsel %vm1598, %v1589, %v1385
      %v1608 = vsel %vm1598, %v1591, %v1387
      %v1610 = vsel %vm1598, %v1593, %v1389
      %v1612 = vsel %vm1598, %v1595, %v1391
      %v1614 = vsel %vm1598, %v1597, %v1393
      %vm1615 = vcmask 392192
      %v1617 = vsel %vm1615, %v1600, %v1427
      %v1619 = vsel %vm1615, %v1602, %v1429
      %v1621 = vsel %vm1615, %v1604, %v1431
      %v1623 = vsel %vm1615, %v1606, %v1433
      %v1625 = vsel %vm1615, %v1608, %v1435
      %v1627 = vsel %vm1615, %v1610, %v1437
      %v1629 = vsel %vm1615, %v1612, %v1439
      %v1631 = vsel %vm1615, %v1614, %v1441
      %vm1632 = vcmask 457728
      %v1634 = vsel %vm1632, %v1617, %v1467
      %v1636 = vsel %vm1632, %v1619, %v1469
      %v1638 = vsel %vm1632, %v1621, %v1471
      %v1640 = vsel %vm1632, %v1623, %v1473
      %v1642 = vsel %vm1632, %v1625, %v1475
      %v1644 = vsel %vm1632, %v1627, %v1477
      %v1646 = vsel %vm1632, %v1629, %v1479
      %v1648 = vsel %vm1632, %v1631, %v1481
      %vm1649 = vcmask 523264
      %v1651 = vsel %vm1649, %v1634, %v1507
      %v1653 = vsel %vm1649, %v1636, %v1509
      %v1655 = vsel %vm1649, %v1638, %v1511
      %v1657 = vsel %vm1649, %v1640, %v1513
      %v1659 = vsel %vm1649, %v1642, %v1515
      %v1661 = vsel %vm1649, %v1644, %v1517
      %v1663 = vsel %vm1649, %v1646, %v1519
      %v1665 = vsel %vm1649, %v1648, %v1521
      %v1666 = vld [vmem:[%s1] sm:$0xf]
      %v1667 = vld [vmem:[%s1 + $0x4] sm:$0xf]
      %v1668 = vld [vmem:[%s1 + $0x8] sm:$0xf]
      %v1669 = vld [vmem:[%s1 + $0xc] sm:$0xf]
      %v1670 = vld [vmem:[%s1 + $0x10] sm:$0xf]
      %v1671 = vld [vmem:[%s1 + $0x14] sm:$0xf]
      %v1672 = vld [vmem:[%s1 + $0x18] sm:$0xf]
      %v1673 = vld [vmem:[%s1 + $0x1c] sm:$0xf]
      %v1674 = vld [vmem:[%s1 + $0x20] sm:$0xf]
      %v1684 = vunpack.c.l.b16 %v1666
      %v1685 = vunpack.c.l.b16 %v1667
      %v1686 = vunpack.c.l.b16 %v1668
      %v1687 = vunpack.c.l.b16 %v1669
      %v1688 = vunpack.c.l.b16 %v1670
      %v1689 = vunpack.c.l.b16 %v1671
      %v1690 = vunpack.c.l.b16 %v1672
      %v1691 = vunpack.c.l.b16 %v1673
      %v1692 = vunpack.c.l.b16 %v1674
      %v1693 = vpack.c.b16 %v1685, %v1684
      %v1694 = vpack.c.b16 %v1687, %v1686
      %v1695 = vpack.c.b16 %v1689, %v1688
      %v1696 = vpack.c.b16 %v1691, %v1690
      %v1697 = vpack.c.b16 %v1692, %v1692
      %vm1702 = vcmask 588800
      %v1703 = vsel %vm1702, %v1651, 0
      %v1705 = vsel %vm1702, %v1653, 0
      %v1707 = vsel %vm1702, %v1655, 0
      %v1709 = vsel %vm1702, %v1657, 0
      %v1711 = vsel %vm1702, %v1659, 0
      %v1713 = vsel %vm1702, %v1661, 0
      %v1715 = vsel %vm1702, %v1663, 0
      %v1717 = vsel %vm1702, %v1665, 0
      %vm1719 = vcmask 1043456
      %v1721 = vsel %vm1719, %v1697, 0
      %1723 = vmatprep.subr.bf16.mxu0 0
      %1724 = vmatpush1.bf16.msra.mxu0 %v1693
      %1725 = vmatprep.subr.bf16.mxu0 0
      %1726 = vmatpush1.bf16.msra.mxu0 %v1694
      %1727 = vmatprep.subr.bf16.mxu0 0
      %1728 = vmatpush1.bf16.msra.mxu0 %v1695
      %1729 = vmatprep.subr.bf16.mxu0 0
      %1730 = vmatpush1.bf16.msra.mxu0 %v1696
      %1731 = vmatprep.subr.bf16.mxu0 0
      %1732 = vmatpush1.bf16.msra.mxu0 %v1721
      %1733 = vmatprep.subr.bf16.mxu0 0
      %1734 = vmatpush1.bf16.msra.mxu0 0
      %1735 = vmatprep.subr.bf16.mxu0 0
      %1736 = vmatpush1.bf16.msra.mxu0 0
      %1737 = vmatprep.subr.bf16.mxu0 0
      %1738 = vmatpush1.bf16.msra.mxu0 0
      %1739 = vmatprep.subr.bf16.mxu0 0
      %1740 = vmatpush1.bf16.msra.mxu0 0
      %1741 = vmatprep.subr.bf16.mxu0 0
      %1742 = vmatpush1.bf16.msra.mxu0 0
      %1743 = vmatprep.subr.bf16.mxu0 0
      %1744 = vmatpush1.bf16.msra.mxu0 0
      %1745 = vmatprep.subr.bf16.mxu0 0
      %1746 = vmatpush1.bf16.msra.mxu0 0
      %1747 = vmatprep.subr.bf16.mxu0 0
      %1748 = vmatpush1.bf16.msra.mxu0 0
      %1749 = vmatprep.subr.bf16.mxu0 0
      %1750 = vmatpush1.bf16.msra.mxu0 0
      %1751 = vmatprep.subr.bf16.mxu0 0
      %1752 = vmatpush1.bf16.msra.mxu0 0
      %1753 = vmatprep.subr.bf16.mxu0 0
      %1754 = vmatpush1.bf16.msra.mxu0 0
      %1755 = vmatprep.mubr.bf16.mxu0 0
      %1756 = vmatmul.mubr.bf16.gmra.mrb[0].mxu0 %v1703
      %v1757 = vpop.f32.mrb[0].mxu0
      %v1758 = vadd.f32 0.0, %v1757
      %v1759 = vpop.f32.mrb[0].mxu0
      %v1760 = vpop.f32.mrb[0].mxu0
      %v1761 = vadd.f32 0.0, %v1760
      %v1762 = vpop.f32.mrb[0].mxu0
      %1763 = vmatprep.mubr.bf16.mxu0 0
      %1764 = vmatmul.mubr.bf16.gmra.mrb[0].mxu0 %v1705
      %v1765 = vpop.f32.mrb[0].mxu0
      %v1766 = vadd.f32 0.0, %v1765
      %v1767 = vpop.f32.mrb[0].mxu0
      %v1768 = vpop.f32.mrb[0].mxu0
      %v1769 = vadd.f32 0.0, %v1768
      %v1770 = vpop.f32.mrb[0].mxu0
      %1771 = vmatprep.mubr.bf16.mxu0 0
      %1772 = vmatmul.mubr.bf16.gmra.mrb[0].mxu0 %v1707
      %v1773 = vpop.f32.mrb[0].mxu0
      %v1774 = vadd.f32 0.0, %v1773
      %v1775 = vpop.f32.mrb[0].mxu0
      %v1776 = vpop.f32.mrb[0].mxu0
      %v1777 = vadd.f32 0.0, %v1776
      %v1778 = vpop.f32.mrb[0].mxu0
      %1779 = vmatprep.mubr.bf16.mxu0 0
      %1780 = vmatmul.mubr.bf16.gmra.mrb[0].mxu0 %v1709
      %v1781 = vpop.f32.mrb[0].mxu0
      %v1782 = vadd.f32 0.0, %v1781
      %v1783 = vpop.f32.mrb[0].mxu0
      %v1784 = vpop.f32.mrb[0].mxu0
      %v1785 = vadd.f32 0.0, %v1784
      %v1786 = vpop.f32.mrb[0].mxu0
      %1787 = vmatprep.mubr.bf16.mxu0 0
      %1788 = vmatmul.mubr.bf16.gmra.mrb[0].mxu0 %v1711
      %v1789 = vpop.f32.mrb[0].mxu0
      %v1790 = vadd.f32 0.0, %v1789
      %v1791 = vpop.f32.mrb[0].mxu0
      %v1792 = vpop.f32.mrb[0].mxu0
      %v1793 = vadd.f32 0.0, %v1792
      %v1794 = vpop.f32.mrb[0].mxu0
      %1795 = vmatprep.mubr.bf16.mxu0 0
      %1796 = vmatmul.mubr.bf16.gmra.mrb[0].mxu0 %v1713
      %v1797 = vpop.f32.mrb[0].mxu0
      %v1798 = vadd.f32 0.0, %v1797
      %v1799 = vpop.f32.mrb[0].mxu0
      %v1800 = vpop.f32.mrb[0].mxu0
      %v1801 = vadd.f32 0.0, %v1800
      %v1802 = vpop.f32.mrb[0].mxu0
      %1803 = vmatprep.mubr.bf16.mxu0 0
      %1804 = vmatmul.mubr.bf16.gmra.mrb[0].mxu0 %v1715
      %v1805 = vpop.f32.mrb[0].mxu0
      %v1806 = vadd.f32 0.0, %v1805
      %v1807 = vpop.f32.mrb[0].mxu0
      %v1808 = vpop.f32.mrb[0].mxu0
      %v1809 = vadd.f32 0.0, %v1808
      %v1810 = vpop.f32.mrb[0].mxu0
      %1811 = vmatprep.mubr.bf16.mxu0 0
      %1812 = vmatmul.mubr.bf16.gmra.mrb[0].mxu0 %v1717
      %v1813 = vpop.f32.mrb[0].mxu0
      %v1814 = vadd.f32 0.0, %v1813
      %v1815 = vpop.f32.mrb[0].mxu0
      %v1816 = vpop.f32.mrb[0].mxu0
      %v1817 = vadd.f32 0.0, %v1816
      %v1818 = vpop.f32.mrb[0].mxu0
      %1819 = vdwg.mxu0
      %v1820 = vld [vmem:[%s2] sm:$0x1]
      %v1822 = vlaneseq
      %v1823 = vshrl.u32 %v1822, 7
      %v1824 = vsub.s32 0, %v1823
      %v1825 = vrot.slane %v1820, %v1824
      %v1827 = vmul.f32 %v1758, %v1825
      %v1828 = vmul.f32 %v1761, %v1825
      %v1829 = vmul.f32 %v1766, %v1825
      %v1830 = vmul.f32 %v1769, %v1825
      %v1831 = vmul.f32 %v1774, %v1825
      %v1832 = vmul.f32 %v1777, %v1825
      %v1833 = vmul.f32 %v1782, %v1825
      %v1834 = vmul.f32 %v1785, %v1825
      %v1835 = vmul.f32 %v1790, %v1825
      %v1836 = vmul.f32 %v1793, %v1825
      %v1837 = vmul.f32 %v1798, %v1825
      %v1838 = vmul.f32 %v1801, %v1825
      %v1839 = vmul.f32 %v1806, %v1825
      %v1840 = vmul.f32 %v1809, %v1825
      %v1841 = vmul.f32 %v1814, %v1825
      %v1842 = vmul.f32 %v1817, %v1825
      %v1843 = vld [vmem:[%s3] sm:$0x1]
      %v1845 = vlaneseq
      %v1846 = vshrl.u32 %v1845, 7
      %v1847 = vsub.s32 0, %v1846
      %v1848 = vrot.slane %v1843, %v1847
      %v1850 = vadd.f32 %v1827, %v1848
      %v1851 = vadd.f32 %v1828, %v1848
      %v1852 = vadd.f32 %v1829, %v1848
      %v1853 = vadd.f32 %v1830, %v1848
      %v1854 = vadd.f32 %v1831, %v1848
      %v1855 = vadd.f32 %v1832, %v1848
      %v1856 = vadd.f32 %v1833, %v1848
      %v1857 = vadd.f32 %v1834, %v1848
      %v1858 = vadd.f32 %v1835, %v1848
      %v1859 = vadd.f32 %v1836, %v1848
      %v1860 = vadd.f32 %v1837, %v1848
      %v1861 = vadd.f32 %v1838, %v1848
      %v1862 = vadd.f32 %v1839, %v1848
      %v1863 = vadd.f32 %v1840, %v1848
      %v1864 = vadd.f32 %v1841, %v1848
      %v1865 = vadd.f32 %v1842, %v1848
      %v1866 = vxor.u32 %v1850, 2147483648
      %v1867 = vxor.u32 %v1851, 2147483648
      %v1868 = vxor.u32 %v1852, 2147483648
      %v1869 = vxor.u32 %v1853, 2147483648
      %v1870 = vxor.u32 %v1854, 2147483648
      %v1871 = vxor.u32 %v1855, 2147483648
      %v1872 = vxor.u32 %v1856, 2147483648
      %v1873 = vxor.u32 %v1857, 2147483648
      %v1874 = vxor.u32 %v1858, 2147483648
      %v1875 = vxor.u32 %v1859, 2147483648
      %v1876 = vxor.u32 %v1860, 2147483648
      %v1877 = vxor.u32 %v1861, 2147483648
      %v1878 = vxor.u32 %v1862, 2147483648
      %v1879 = vxor.u32 %v1863, 2147483648
      %v1880 = vxor.u32 %v1864, 2147483648
      %v1881 = vxor.u32 %v1865, 2147483648
      %v1882 = vmul.f32 %v1866, 1.442695
      %v1883 = vpow.pop %v1882
      %v1884 = vmul.f32 %v1867, 1.442695
      %v1885 = vpow.pop %v1884
      %v1886 = vmul.f32 %v1868, 1.442695
      %v1887 = vpow.pop %v1886
      %v1888 = vmul.f32 %v1869, 1.442695
      %v1889 = vpow.pop %v1888
      %v1890 = vmul.f32 %v1870, 1.442695
      %v1891 = vpow.pop %v1890
      %v1892 = vmul.f32 %v1871, 1.442695
      %v1893 = vpow.pop %v1892
      %v1894 = vmul.f32 %v1872, 1.442695
      %v1895 = vpow.pop %v1894
      %v1896 = vmul.f32 %v1873, 1.442695
      %v1897 = vpow.pop %v1896
      %v1898 = vmul.f32 %v1874, 1.442695
      %v1899 = vpow.pop %v1898
      %v1900 = vmul.f32 %v1875, 1.442695
      %v1901 = vpow.pop %v1900
      %v1902 = vmul.f32 %v1876, 1.442695
      %v1903 = vpow.pop %v1902
      %v1904 = vmul.f32 %v1877, 1.442695
      %v1905 = vpow.pop %v1904
      %v1906 = vmul.f32 %v1878, 1.442695
      %v1907 = vpow.pop %v1906
      %v1908 = vmul.f32 %v1879, 1.442695
      %v1909 = vpow.pop %v1908
      %v1910 = vmul.f32 %v1880, 1.442695
      %v1911 = vpow.pop %v1910
      %v1912 = vmul.f32 %v1881, 1.442695
      %v1913 = vpow.pop %v1912
      %v1914 = vadd.f32 %v1883, 1.0
      %v1915 = vadd.f32 %v1885, 1.0
      %v1916 = vadd.f32 %v1887, 1.0
      %v1917 = vadd.f32 %v1889, 1.0
      %v1918 = vadd.f32 %v1891, 1.0
      %v1919 = vadd.f32 %v1893, 1.0
      %v1920 = vadd.f32 %v1895, 1.0
      %v1921 = vadd.f32 %v1897, 1.0
      %v1922 = vadd.f32 %v1899, 1.0
      %v1923 = vadd.f32 %v1901, 1.0
      %v1924 = vadd.f32 %v1903, 1.0
      %v1925 = vadd.f32 %v1905, 1.0
      %v1926 = vadd.f32 %v1907, 1.0
      %v1927 = vadd.f32 %v1909, 1.0
      %v1928 = vadd.f32 %v1911, 1.0
      %v1929 = vadd.f32 %v1913, 1.0
      %v1930 = vrcp.pop %v1914
      %v1931 = vmul.f32 1.0, %v1930
      %v1932 = vrcp.pop %v1915
      %v1933 = vmul.f32 1.0, %v1932
      %v1934 = vrcp.pop %v1916
      %v1935 = vmul.f32 1.0, %v1934
      %v1936 = vrcp.pop %v1917
      %v1937 = vmul.f32 1.0, %v1936
      %v1938 = vrcp.pop %v1918
      %v1939 = vmul.f32 1.0, %v1938
      %v1940 = vrcp.pop %v1919
      %v1941 = vmul.f32 1.0, %v1940
      %v1942 = vrcp.pop %v1920
      %v1943 = vmul.f32 1.0, %v1942
      %v1944 = vrcp.pop %v1921
      %v1945 = vmul.f32 1.0, %v1944
      %v1946 = vrcp.pop %v1922
      %v1947 = vmul.f32 1.0, %v1946
      %v1948 = vrcp.pop %v1923
      %v1949 = vmul.f32 1.0, %v1948
      %v1950 = vrcp.pop %v1924
      %v1951 = vmul.f32 1.0, %v1950
      %v1952 = vrcp.pop %v1925
      %v1953 = vmul.f32 1.0, %v1952
      %v1954 = vrcp.pop %v1926
      %v1955 = vmul.f32 1.0, %v1954
      %v1956 = vrcp.pop %v1927
      %v1957 = vmul.f32 1.0, %v1956
      %v1958 = vrcp.pop %v1928
      %v1959 = vmul.f32 1.0, %v1958
      %v1960 = vrcp.pop %v1929
      %v1961 = vmul.f32 1.0, %v1960
      %v1962 = vmul.f32 %v1850, %v1931
      %v1963 = vmul.f32 %v1851, %v1933
      %v1964 = vmul.f32 %v1852, %v1935
      %v1965 = vmul.f32 %v1853, %v1937
      %v1966 = vmul.f32 %v1854, %v1939
      %v1967 = vmul.f32 %v1855, %v1941
      %v1968 = vmul.f32 %v1856, %v1943
      %v1969 = vmul.f32 %v1857, %v1945
      %v1970 = vmul.f32 %v1858, %v1947
      %v1971 = vmul.f32 %v1859, %v1949
      %v1972 = vmul.f32 %v1860, %v1951
      %v1973 = vmul.f32 %v1861, %v1953
      %v1974 = vmul.f32 %v1862, %v1955
      %v1975 = vmul.f32 %v1863, %v1957
      %v1976 = vmul.f32 %v1864, %v1959
      %v1977 = vmul.f32 %v1865, %v1961
      %v1978 = vunpack.c.l.bf16 %v542
      %v1979 = vunpack.c.l.bf16 %v543
      %v1980 = vunpack.c.l.bf16 %v558
      %v1981 = vunpack.c.l.bf16 %v544
      %v1982 = vunpack.c.l.bf16 %v545
      %v1983 = vunpack.c.l.bf16 %v559
      %v1984 = vunpack.c.l.bf16 %v546
      %v1985 = vunpack.c.l.bf16 %v547
      %v1986 = vunpack.c.l.bf16 %v560
      %v1987 = vunpack.c.l.bf16 %v548
      %v1988 = vunpack.c.l.bf16 %v549
      %v1989 = vunpack.c.l.bf16 %v561
      %v1990 = vunpack.c.l.bf16 %v550
      %v1991 = vunpack.c.l.bf16 %v551
      %v1992 = vunpack.c.l.bf16 %v562
      %v1993 = vunpack.c.l.bf16 %v552
      %v1994 = vunpack.c.l.bf16 %v553
      %v1995 = vunpack.c.l.bf16 %v563
      %v1996 = vunpack.c.l.bf16 %v554
      %v1997 = vunpack.c.l.bf16 %v555
      %v1998 = vunpack.c.l.bf16 %v564
      %v1999 = vunpack.c.l.bf16 %v556
      %v2000 = vunpack.c.l.bf16 %v557
      %v2001 = vunpack.c.l.bf16 %v565
      %vm2026 = vcmask 1046528
      %v2027 = vrot.slane %v1978, 1
      %v2028 = vrot.slane %v1979, 1
      %v2029 = vsel %vm2026, %v2027, %v2028
      %v2030 = vrot.slane %v1980, 1
      %v2031 = vsel %vm2026, %v2028, %v2030
      %v2032 = vrot.slane %v1981, 1
      %v2033 = vrot.slane %v1982, 1
      %v2034 = vsel %vm2026, %v2032, %v2033
      %v2035 = vrot.slane %v1983, 1
      %v2036 = vsel %vm2026, %v2033, %v2035
      %v2037 = vrot.slane %v1984, 1
      %v2038 = vrot.slane %v1985, 1
      %v2039 = vsel %vm2026, %v2037, %v2038
      %v2040 = vrot.slane %v1986, 1
      %v2041 = vsel %vm2026, %v2038, %v2040
      %v2042 = vrot.slane %v1987, 1
      %v2043 = vrot.slane %v1988, 1
      %v2044 = vsel %vm2026, %v2042, %v2043
      %v2045 = vrot.slane %v1989, 1
      %v2046 = vsel %vm2026, %v2043, %v2045
      %v2047 = vrot.slane %v1990, 1
      %v2048 = vrot.slane %v1991, 1
      %v2049 = vsel %vm2026, %v2047, %v2048
      %v2050 = vrot.slane %v1992, 1
      %v2051 = vsel %vm2026, %v2048, %v2050
      %v2052 = vrot.slane %v1993, 1
      %v2053 = vrot.slane %v1994, 1
      %v2054 = vsel %vm2026, %v2052, %v2053
      %v2055 = vrot.slane %v1995, 1
      %v2056 = vsel %vm2026, %v2053, %v2055
      %v2057 = vrot.slane %v1996, 1
      %v2058 = vrot.slane %v1997, 1
      %v2059 = vsel %vm2026, %v2057, %v2058
      %v2060 = vrot.slane %v1998, 1
      %v2061 = vsel %vm2026, %v2058, %v2060
      %v2062 = vrot.slane %v1999, 1
      %v2063 = vrot.slane %v2000, 1
      %v2064 = vsel %vm2026, %v2062, %v2063
      %v2065 = vrot.slane %v2001, 1
      %v2066 = vsel %vm2026, %v2063, %v2065
      %v2083 = vadd.f32 %v1962, %v2029
      %v2084 = vadd.f32 %v1963, %v2031
      %v2085 = vadd.f32 %v1964, %v2034
      %v2086 = vadd.f32 %v1965, %v2036
      %v2087 = vadd.f32 %v1966, %v2039
      %v2088 = vadd.f32 %v1967, %v2041
      %v2089 = vadd.f32 %v1968, %v2044
      %v2090 = vadd.f32 %v1969, %v2046
      %v2091 = vadd.f32 %v1970, %v2049
      %v2092 = vadd.f32 %v1971, %v2051
      %v2093 = vadd.f32 %v1972, %v2054
      %v2094 = vadd.f32 %v1973, %v2056
      %v2095 = vadd.f32 %v1974, %v2059
      %v2096 = vadd.f32 %v1975, %v2061
      %v2097 = vadd.f32 %v1976, %v2064
      %v2098 = vadd.f32 %v1977, %v2066
      %v2099 = vpack.c.bf16 %v2084, %v2083
      %v2100 = vpack.c.bf16 %v2086, %v2085
      %v2101 = vpack.c.bf16 %v2088, %v2087
      %v2102 = vpack.c.bf16 %v2090, %v2089
      %v2103 = vpack.c.bf16 %v2092, %v2091
      %v2104 = vpack.c.bf16 %v2094, %v2093
      %v2105 = vpack.c.bf16 %v2096, %v2095
      %v2106 = vpack.c.bf16 %v2098, %v2097
      %v2115 = vunpack.c.l.b16 %v2099
      %v2116 = vunpack.c.h.b16 %v2099
      %v2117 = vunpack.c.l.b16 %v2100
      %v2118 = vunpack.c.h.b16 %v2100
      %v2119 = vunpack.c.l.b16 %v2101
      %v2120 = vunpack.c.h.b16 %v2101
      %v2121 = vunpack.c.l.b16 %v2102
      %v2122 = vunpack.c.h.b16 %v2102
      %v2123 = vunpack.c.l.b16 %v2103
      %v2124 = vunpack.c.h.b16 %v2103
      %v2125 = vunpack.c.l.b16 %v2104
      %v2126 = vunpack.c.h.b16 %v2104
      %v2127 = vunpack.c.l.b16 %v2105
      %v2128 = vunpack.c.h.b16 %v2105
      %v2129 = vunpack.c.l.b16 %v2106
      %v2130 = vunpack.c.h.b16 %v2106
      %v2131 = vpack.c.b16 %v2115, %v2115
      %v2132 = vpack.c.b16 %v2116, %v2116
      %v2133 = vpack.c.b16 %v2117, %v2117
      %v2134 = vpack.c.b16 %v2118, %v2118
      %v2135 = vpack.c.b16 %v2119, %v2119
      %v2136 = vpack.c.b16 %v2120, %v2120
      %v2137 = vpack.c.b16 %v2121, %v2121
      %v2138 = vpack.c.b16 %v2122, %v2122
      %v2139 = vpack.c.b16 %v2123, %v2123
      %v2140 = vpack.c.b16 %v2124, %v2124
      %v2141 = vpack.c.b16 %v2125, %v2125
      %v2142 = vpack.c.b16 %v2126, %v2126
      %v2143 = vpack.c.b16 %v2127, %v2127
      %v2144 = vpack.c.b16 %v2128, %v2128
      %v2145 = vpack.c.b16 %v2129, %v2129
      %v2146 = vpack.c.b16 %v2130, %v2130
      %vm2163 = vcmask 60416
      %2164 = vst.msk [vmem:[%s221] sm:$0xf] %vm2163, %v2131
      %2165 = vst.msk [vmem:[%s221 + $0x4] sm:$0xf] %vm2163, %v2132
      %2166 = vst.msk [vmem:[%s221 + $0x8] sm:$0xf] %vm2163, %v2133
      %2167 = vst.msk [vmem:[%s221 + $0xc] sm:$0xf] %vm2163, %v2134
      %2168 = vst.msk [vmem:[%s221 + $0x10] sm:$0xf] %vm2163, %v2135
      %2169 = vst.msk [vmem:[%s221 + $0x14] sm:$0xf] %vm2163, %v2136
      %2170 = vst.msk [vmem:[%s221 + $0x18] sm:$0xf] %vm2163, %v2137
      %2171 = vst.msk [vmem:[%s221 + $0x1c] sm:$0xf] %vm2163, %v2138
      %2172 = vst.msk [vmem:[%s221 + $0x20] sm:$0xf] %vm2163, %v2139
      %2173 = vst.msk [vmem:[%s221 + $0x24] sm:$0xf] %vm2163, %v2140
      %2174 = vst.msk [vmem:[%s221 + $0x28] sm:$0xf] %vm2163, %v2141
      %2175 = vst.msk [vmem:[%s221 + $0x2c] sm:$0xf] %vm2163, %v2142
      %2176 = vst.msk [vmem:[%s221 + $0x30] sm:$0xf] %vm2163, %v2143
      %2177 = vst.msk [vmem:[%s221 + $0x34] sm:$0xf] %vm2163, %v2144
      %2178 = vst.msk [vmem:[%s221 + $0x38] sm:$0xf] %vm2163, %v2145
      %2179 = vst.msk [vmem:[%s221 + $0x3c] sm:$0xf] %vm2163, %v2146
      %s2180 = smul.u32 8, %s20
      %p2181 = scmp.lt.s32.totalorder %s19, 1
      %s2182 = scalar_select %p2181, %s19, 1
      %p2183 = scmp.lt.s32.totalorder %s2180, 15
      %s2184 = scalar_select %p2183, %s2180, 15
      %s2185 = smul.addr %s2184, 2
      %s2186 = smul.addr %s2182, 32
      %s2187 = sadd.s32 %s2185, %s2186
      %s2188 = smul.addr %s2187, 4
      %s2189 = scalar_lea.vmem %s4, %s2188
      // Predicated region
      $region37: #{tpu_custom_call.1} parent=35 // pred_check
        %p2190 = pneg %p136
      $region38: #{tpu_custom_call.1} parent=35 // pred_check_branch
        %2192 = sbr.rel (%p2190) target = $region40
      $region39: #{tpu_custom_call.1} parent=35 // pred_region
        %s2193 = smul.u32 8, %s20
      $region40: #{tpu_custom_call.1} parent=35 // pred_fallthru
        _
    $region36: #{tpu_custom_call.1} parent=5 // pred_fallthru
      _
    %p2194 = scmp.le.s32.totalorder 2, %s10
    // Predicated region
    $region41: #{tpu_custom_call.1} parent=5 // pred_check
      %p2195 = pneg %p2194
    $region42: #{tpu_custom_call.1} parent=5 // pred_check_branch
      %2197 = sbr.rel (%p2195) target = $region44
    $region43: #{tpu_custom_call.1} parent=5 // pred_region
      %s2198 = ssub.s32 %s10, 2
      // Predicated region
      $region45: #{tpu_custom_call.1} parent=43 // pred_check
        %p2199 = pneg %p142
      $region46: #{tpu_custom_call.1} parent=43 // pred_check_branch
        %2201 = sbr.rel (%p2199) target = $region48
      $region47: #{tpu_custom_call.1} parent=43 // pred_region
        %s2202 = smul.u32 8, %s22
        %p2203 = scmp.lt.s32.totalorder %s21, 1
        %s2204 = scalar_select %p2203, %s21, 1
        %p2205 = scmp.lt.s32.totalorder %s2202, 15
        %s2206 = scalar_select %p2205, %s2202, 15
        %s2207 = smul.addr %s2206, 2
        %s2208 = smul.addr %s2204, 32
        %s2209 = sadd.s32 %s2207, %s2208
        %s2210 = smul.addr %s2209, 4
        %s2211 = scalar_lea.vmem %s4, %s2210
      $region48: #{tpu_custom_call.1} parent=43 // pred_fallthru
        _
    $region44: #{tpu_custom_call.1} parent=5 // pred_fallthru
      _
  $region6: #{tpu_custom_call.1} parent=0 // loop_footer
    %s14 = sadd.s32 1, %s10
  $region7: #{tpu_custom_call.1} parent=0 // loop_footer_branch
    %9 = sbr.rel target = $region3
  $region8: #{tpu_custom_call.1} parent=0 // loop_exit
    _

</llo_original>
